<compile_context>
chip_gen: v6e
topology: v6e:2x2x1
jax: 0.10.0
libtpu: 0.0.40
codegen_flags: <defaults>
</compile_context>

<pallas_src>
import functools

import jax
import jax.numpy as jnp
from jax.experimental import pallas as pl
from jax.experimental.pallas import tpu as pltpu

EPS = 1e-9


def _make_tps_kernel(k, th, tw, step_x, step_y):
    """Warp kernel for one (1, 2, th, tw) channel-major output block.

    params_ref (SMEM, full array): (n, 5k+6) f32 laid out as
        [ a[0:k] | b[0:k] | c[0:k] | wx[0:k] | wy[0:k] | ax[0:3] | ay[0:3] ]
    with a_j = -2*cx_j, b_j = -2*cy_j, c_j = cx_j^2 + cy_j^2 + EPS.
    o_ref (VMEM block): (1, 2, th, tw) f32.
    """
    off_a, off_b, off_c = 0, k, 2 * k
    off_wx, off_wy = 3 * k, 4 * k
    off_ax, off_ay = 5 * k, 5 * k + 3

    # Row-strip height: 8 sublanes (one f32 vreg row-group) when possible.
    sr = 8 if th % 8 == 0 else th
    n_strips = th // sr

    def kernel(params_ref, o_ref):
        b = pl.program_id(0)
        i0 = pl.program_id(1) * th          # global row offset of this block
        j0 = pl.program_id(2) * tw          # global col offset of this block

        # ---- read every per-batch scalar exactly once (SMEM sld, loop-invariant) ----
        a_s = [params_ref[b, off_a + j] for j in range(k)]
        b_s = [params_ref[b, off_b + j] for j in range(k)]
        c_s = [params_ref[b, off_c + j] for j in range(k)]
        wx_s = [params_ref[b, off_wx + j] for j in range(k)]
        wy_s = [params_ref[b, off_wy + j] for j in range(k)]
        ax0, ax1, ax2 = (params_ref[b, off_ax + i] for i in range(3))
        ay0, ay1, ay2 = (params_ref[b, off_ay + i] for i in range(3))

        # ---- strip-invariant (sr, tw) quantities (hoisted above the row loop) ----
        col = jax.lax.broadcasted_iota(jnp.int32, (sr, tw), 1)
        row = jax.lax.broadcasted_iota(jnp.int32, (sr, tw), 0)
        gx = (col + j0).astype(jnp.float32) * step_x - 1.0   # linspace(-1,1,w)[col]
        gy_base = row.astype(jnp.float32) * step_y
        gx2 = gx * gx
        axg = ax0 + ax1 * gx        # affine-in-gx part of the x channel
        ayg = ay0 + ay1 * gx        # affine-in-gx part of the y channel

        def emit_strip(row0):
            # gy for this strip: linspace(-1,1,h)[i0 + row0 + r]
            gy = gy_base + ((i0 + row0).astype(jnp.float32) * step_y - 1.0)
            r2 = gx2 + gy * gy
            acc_x = axg + ax2 * gy
            acc_y = ayg + ay2 * gy
            # Fully unrolled per-control-point loop: 1 log (EUP) + ~11 VPU ops per j.
            # Likely EUP-bound for k >= ~8 on v5e/v6e (review item 4); the max below
            # is VALU filler under that roofline.
            for j in range(k):
                d2e = r2 + a_s[j] * gx + b_s[j] * gy + c_s[j]   # == d2 + EPS
                d2e = jnp.maximum(d2e, EPS)      # guard f32 cancellation near ctrl pts
                u = d2e * jnp.log(d2e)           # (d2+eps)*log(d2+eps); diff vs ref ~2e-8
                acc_x = acc_x + wx_s[j] * u
                acc_y = acc_y + wy_s[j] * u
            o_ref[0, 0, pl.ds(row0, sr), :] = acc_x.astype(o_ref.dtype)
            o_ref[0, 1, pl.ds(row0, sr), :] = acc_y.astype(o_ref.dtype)

        if n_strips == 1:
            emit_strip(0)
        else:
            def body(s, carry):
                emit_strip(pl.multiple_of(s * sr, sr))
                return carry
            jax.lax.fori_loop(0, n_strips, body, 0)

    return kernel


def _pick_tile(dim, align, max_tile):
    """Largest multiple of `align` that divides `dim` and is <= max_tile; else full dim."""
    best = 0
    t = align
    limit = min(max_tile, dim)
    while t <= limit:
        if dim % t == 0:
            best = t
        t += align
    return best if best else dim   # full-dim block sidesteps the (8,128) rule


def _tps_pallas_warp(params, *, n, k, h, w):
    # Lane tile: any multiple of 128 dividing w, up to 512 (keeps the (8, tw) strip
    # working set well under 64 vregs -> no spills). Row tile: multiple of 8 up to 256;
    # when n == 1, cap at h//2 so the all-"parallel" grid has >= 2 blocks and both v7x
    # TensorCores get work (no-op cost on v5e/v6e).
    tw = _pick_tile(w, 128, 512)
    max_th = 256
    if n == 1 and h >= 16:
        max_th = min(max_th, max(8, (h // 2) // 8 * 8))
    th = _pick_tile(h, 8, max_th)

    step_x = 2.0 / (w - 1) if w > 1 else 0.0
    step_y = 2.0 / (h - 1) if h > 1 else 0.0

    kernel = _make_tps_kernel(k, th, tw, step_x, step_y)
    return pl.pallas_call(
        kernel,
        out_shape=jax.ShapeDtypeStruct((n, 2, h, w), jnp.float32),
        grid=(n, h // th, w // tw),
        # Tiny per-batch parameter table lives whole in SMEM (known-good path);
        # per-batch SMEM blocking would only matter for very large n.
        in_specs=[pl.BlockSpec(memory_space=pltpu.MemorySpace.SMEM)],
        out_specs=pl.BlockSpec((1, 2, th, tw), lambda b, i, j: (b, 0, i, j)),
        compiler_params=pltpu.CompilerParams(
            dimension_semantics=("parallel", "parallel", "parallel")),
    )(params)


@functools.partial(jax.jit, static_argnames=("w", "h"))
def tps_forward(X, Y, w, h):
    """JAX/Pallas equivalent of TPS.forward(X, Y, w, h).

    X, Y: (n, k, 2) float32 control points (source / target).
    Returns (n, h, w, 2) float32 warped sampling grid.
    Matches the PyTorch module exactly for n == 1 (the reference's
    Z = zeros(1, k+3, 2) only supports n == 1); for n > 1 the solve is per-batch.
    """
    X = X.astype(jnp.float32)
    Y = Y.astype(jnp.float32)
    n, k = X.shape[:2]

    # ---------------- glue: build the (k+3)x(k+3) TPS system and solve it ----------------
    diff = X[:, :, None, :] - X[:, None, :, :]                  # (n, k, k, 2)
    D2 = jnp.sum(diff * diff, axis=-1)                          # (n, k, k)
    Kmat = D2 * jnp.log(D2 + EPS)                               # (n, k, k)
    P = jnp.concatenate([jnp.ones((n, k, 1), jnp.float32), X], axis=-1)  # (n, k, 3)

    top = jnp.concatenate([Kmat, P], axis=-1)                               # (n, k, k+3)
    bot = jnp.concatenate(
        [jnp.transpose(P, (0, 2, 1)), jnp.zeros((n, 3, 3), jnp.float32)], axis=-1)
    L = jnp.concatenate([top, bot], axis=1)                                 # (n, k+3, k+3)
    Z = jnp.concatenate([Y, jnp.zeros((n, 3, 2), jnp.float32)], axis=1)     # (n, k+3, 2)

    # TODO(synk): torch.lu + torch.lu_solve have no Pallas equivalent; the dense solve
    # stays in XLA (identical solution).
    Q = jnp.linalg.solve(L, Z)                                  # (n, k+3, 2)
    Wc = Q[:, :k, :]                                            # (n, k, 2)
    A = Q[:, k:, :]                                             # (n, 3, 2)

    # ---------------- pack tiny per-batch parameters (distance expansion folded) ---------
    cx, cy = X[:, :, 0], X[:, :, 1]
    params = jnp.concatenate(
        [-2.0 * cx, -2.0 * cy, cx * cx + cy * cy + EPS,   # expanded |g - c|^2 terms (+eps)
         Wc[:, :, 0], Wc[:, :, 1],                        # RBF weights (x / y channels)
         A[:, :, 0], A[:, :, 1]],                         # affine coeffs (x / y channels)
        axis=-1)                                          # (n, 5k + 6)

    # ---------------- Pallas hot path: in-kernel grid gen + strip-mined RBF warp ---------
    out_chw = _tps_pallas_warp(params, n=n, k=k, h=h, w=w)      # (n, 2, h, w)

    # TODO(synk): channel-last layout required for API parity; this transpose is one extra
    # HBM round-trip of the output. An in-kernel x/y lane interleave would need an
    # (8,TW,2)->(8,2*TW) relayout Mosaic doesn't lower reliably, so it stays in XLA;
    # channel-major consumers should use out_chw directly.
    return jnp.transpose(out_chw, (0, 2, 3, 1))                 # (n, h, w, 2)


def _tps_reference(X, Y, w, h):
    """Pure-JAX reference mirroring the PyTorch code, for a sanity check."""
    n, k = X.shape[:2]
    gx = jnp.linspace(-1.0, 1.0, w, dtype=jnp.float32)
    gy = jnp.linspace(-1.0, 1.0, h, dtype=jnp.float32)
    grid = jnp.stack(
        [jnp.broadcast_to(gx[None, :], (h, w)),
         jnp.broadcast_to(gy[:, None], (h, w))], axis=-1).reshape(1, h * w, 2)

    diff = X[:, :, None, :] - X[:, None, :, :]
    D2 = jnp.sum(diff * diff, axis=-1)
    K = D2 * jnp.log(D2 + EPS)
    P = jnp.concatenate([jnp.ones((n, k, 1), jnp.float32), X], axis=-1)
    top = jnp.concatenate([K, P], axis=-1)
    bot = jnp.concatenate(
        [jnp.transpose(P, (0, 2, 1)), jnp.zeros((n, 3, 3), jnp.float32)], axis=-1)
    L = jnp.concatenate([top, bot], axis=1)
    Z = jnp.concatenate([Y, jnp.zeros((n, 3, 2), jnp.float32)], axis=1)
    Q = jnp.linalg.solve(L, Z)
    Wc, A = Q[:, :k, :], Q[:, k:, :]

    d = grid[:, :, None, :] - X[:, None, :, :]
    D2g = jnp.sum(d * d, axis=-1)
    U = D2g * jnp.log(D2g + EPS)
    Pg = jnp.concatenate(
        [jnp.ones((1, h * w, 1), jnp.float32),
         jnp.broadcast_to(grid, (1, h * w, 2))], axis=-1)
    out = jnp.matmul(Pg, A) + jnp.matmul(U, Wc)
    return out.reshape(-1, h, w, 2)


if __name__ == "__main__":
    key = jax.random.PRNGKey(0)
    k_src, k_off, k_src2, k_off2 = jax.random.split(key, 4)

    # Case 1: shapes matching the PyTorch module's typical use (n=1).
    # (n=1 also exercises the v7x >=2-parallel-blocks row split.)
    n, k = 1, 8
    h, w = 16, 16
    X = jax.random.uniform(k_src, (n, k, 2), jnp.float32, minval=-1.0, maxval=1.0)
    Y = X + 0.1 * jax.random.normal(k_off, (n, k, 2), jnp.float32)

    out = tps_forward(X, Y, w, h)
    out = jax.block_until_ready(out)
    ref = _tps_reference(X, Y, w, h)
    assert out.shape == (n, h, w, 2), out.shape
    assert jnp.allclose(out, ref, rtol=1e-3, atol=1e-3), "Pallas TPS mismatch (case 1)"

    # Case 2: batched + multi-strip path (exercises the fori_loop strip-mining,
    # the 128-multiple lane-tile search, and the in-kernel iota offsets).
    n2, k2 = 2, 12
    h2, w2 = 48, 384
    X2 = jax.random.uniform(k_src2, (n2, k2, 2), jnp.float32, minval=-1.0, maxval=1.0)
    Y2 = X2 + 0.1 * jax.random.normal(k_off2, (n2, k2, 2), jnp.float32)

    out2 = tps_forward(X2, Y2, w2, h2)
    out2 = jax.block_until_ready(out2)
    ref2 = _tps_reference(X2, Y2, w2, h2)
    assert out2.shape == (n2, h2, w2, 2), out2.shape
    assert jnp.allclose(out2, ref2, rtol=1e-3, atol=1e-3), "Pallas TPS mismatch (case 2)"

    print("KERNEL_OK")
</pallas_src>

<mosaic_0001>
module attributes {stable_mosaic.version = 11 : i64} {
  func.func @kernel(%arg0: i32, %arg1: i32, %arg2: i32, %arg3: memref<1x46xf32, #tpu.memory_space<smem>>, %arg4: memref<1x2x8x16xf32, #tpu.memory_space<vmem>>) attributes {dimension_semantics = [#tpu.dimension_semantics<parallel>, #tpu.dimension_semantics<parallel>, #tpu.dimension_semantics<parallel>], iteration_bounds = array<i64: 1, 2, 1>, scalar_prefetch = 0 : i64, scratch_operands = 0 : i64, tpu.core_type = #tpu.core_type<tc>, window_params = [{transform_indices = @transform_0, window_bounds = array<i64: 1, 46>}, {transform_indices = @transform_1, window_bounds = array<i64: 1, 2, 8, 16>}]} {
    %c8_i32 = arith.constant 8 : i32
    %0 = arith.muli %arg1, %c8_i32 : i32
    %c16_i32 = arith.constant 16 : i32
    %1 = arith.muli %arg2, %c16_i32 : i32
    %2 = arith.index_cast %arg0 : i32 to index
    %c0 = arith.constant 0 : index
    %3 = memref.load %arg3[%2, %c0] : memref<1x46xf32, #tpu.memory_space<smem>>
    %4 = arith.index_cast %arg0 : i32 to index
    %c1 = arith.constant 1 : index
    %5 = memref.load %arg3[%4, %c1] : memref<1x46xf32, #tpu.memory_space<smem>>
    %6 = arith.index_cast %arg0 : i32 to index
    %c2 = arith.constant 2 : index
    %7 = memref.load %arg3[%6, %c2] : memref<1x46xf32, #tpu.memory_space<smem>>
    %8 = arith.index_cast %arg0 : i32 to index
    %c3 = arith.constant 3 : index
    %9 = memref.load %arg3[%8, %c3] : memref<1x46xf32, #tpu.memory_space<smem>>
    %10 = arith.index_cast %arg0 : i32 to index
    %c4 = arith.constant 4 : index
    %11 = memref.load %arg3[%10, %c4] : memref<1x46xf32, #tpu.memory_space<smem>>
    %12 = arith.index_cast %arg0 : i32 to index
    %c5 = arith.constant 5 : index
    %13 = memref.load %arg3[%12, %c5] : memref<1x46xf32, #tpu.memory_space<smem>>
    %14 = arith.index_cast %arg0 : i32 to index
    %c6 = arith.constant 6 : index
    %15 = memref.load %arg3[%14, %c6] : memref<1x46xf32, #tpu.memory_space<smem>>
    %16 = arith.index_cast %arg0 : i32 to index
    %c7 = arith.constant 7 : index
    %17 = memref.load %arg3[%16, %c7] : memref<1x46xf32, #tpu.memory_space<smem>>
    %18 = arith.index_cast %arg0 : i32 to index
    %c8 = arith.constant 8 : index
    %19 = memref.load %arg3[%18, %c8] : memref<1x46xf32, #tpu.memory_space<smem>>
    %20 = arith.index_cast %arg0 : i32 to index
    %c9 = arith.constant 9 : index
    %21 = memref.load %arg3[%20, %c9] : memref<1x46xf32, #tpu.memory_space<smem>>
    %22 = arith.index_cast %arg0 : i32 to index
    %c10 = arith.constant 10 : index
    %23 = memref.load %arg3[%22, %c10] : memref<1x46xf32, #tpu.memory_space<smem>>
    %24 = arith.index_cast %arg0 : i32 to index
    %c11 = arith.constant 11 : index
    %25 = memref.load %arg3[%24, %c11] : memref<1x46xf32, #tpu.memory_space<smem>>
    %26 = arith.index_cast %arg0 : i32 to index
    %c12 = arith.constant 12 : index
    %27 = memref.load %arg3[%26, %c12] : memref<1x46xf32, #tpu.memory_space<smem>>
    %28 = arith.index_cast %arg0 : i32 to index
    %c13 = arith.constant 13 : index
    %29 = memref.load %arg3[%28, %c13] : memref<1x46xf32, #tpu.memory_space<smem>>
    %30 = arith.index_cast %arg0 : i32 to index
    %c14 = arith.constant 14 : index
    %31 = memref.load %arg3[%30, %c14] : memref<1x46xf32, #tpu.memory_space<smem>>
    %32 = arith.index_cast %arg0 : i32 to index
    %c15 = arith.constant 15 : index
    %33 = memref.load %arg3[%32, %c15] : memref<1x46xf32, #tpu.memory_space<smem>>
    %34 = arith.index_cast %arg0 : i32 to index
    %c16 = arith.constant 16 : index
    %35 = memref.load %arg3[%34, %c16] : memref<1x46xf32, #tpu.memory_space<smem>>
    %36 = arith.index_cast %arg0 : i32 to index
    %c17 = arith.constant 17 : index
    %37 = memref.load %arg3[%36, %c17] : memref<1x46xf32, #tpu.memory_space<smem>>
    %38 = arith.index_cast %arg0 : i32 to index
    %c18 = arith.constant 18 : index
    %39 = memref.load %arg3[%38, %c18] : memref<1x46xf32, #tpu.memory_space<smem>>
    %40 = arith.index_cast %arg0 : i32 to index
    %c19 = arith.constant 19 : index
    %41 = memref.load %arg3[%40, %c19] : memref<1x46xf32, #tpu.memory_space<smem>>
    %42 = arith.index_cast %arg0 : i32 to index
    %c20 = arith.constant 20 : index
    %43 = memref.load %arg3[%42, %c20] : memref<1x46xf32, #tpu.memory_space<smem>>
    %44 = arith.index_cast %arg0 : i32 to index
    %c21 = arith.constant 21 : index
    %45 = memref.load %arg3[%44, %c21] : memref<1x46xf32, #tpu.memory_space<smem>>
    %46 = arith.index_cast %arg0 : i32 to index
    %c22 = arith.constant 22 : index
    %47 = memref.load %arg3[%46, %c22] : memref<1x46xf32, #tpu.memory_space<smem>>
    %48 = arith.index_cast %arg0 : i32 to index
    %c23 = arith.constant 23 : index
    %49 = memref.load %arg3[%48, %c23] : memref<1x46xf32, #tpu.memory_space<smem>>
    %50 = arith.index_cast %arg0 : i32 to index
    %c24 = arith.constant 24 : index
    %51 = memref.load %arg3[%50, %c24] : memref<1x46xf32, #tpu.memory_space<smem>>
    %52 = arith.index_cast %arg0 : i32 to index
    %c25 = arith.constant 25 : index
    %53 = memref.load %arg3[%52, %c25] : memref<1x46xf32, #tpu.memory_space<smem>>
    %54 = arith.index_cast %arg0 : i32 to index
    %c26 = arith.constant 26 : index
    %55 = memref.load %arg3[%54, %c26] : memref<1x46xf32, #tpu.memory_space<smem>>
    %56 = arith.index_cast %arg0 : i32 to index
    %c27 = arith.constant 27 : index
    %57 = memref.load %arg3[%56, %c27] : memref<1x46xf32, #tpu.memory_space<smem>>
    %58 = arith.index_cast %arg0 : i32 to index
    %c28 = arith.constant 28 : index
    %59 = memref.load %arg3[%58, %c28] : memref<1x46xf32, #tpu.memory_space<smem>>
    %60 = arith.index_cast %arg0 : i32 to index
    %c29 = arith.constant 29 : index
    %61 = memref.load %arg3[%60, %c29] : memref<1x46xf32, #tpu.memory_space<smem>>
    %62 = arith.index_cast %arg0 : i32 to index
    %c30 = arith.constant 30 : index
    %63 = memref.load %arg3[%62, %c30] : memref<1x46xf32, #tpu.memory_space<smem>>
    %64 = arith.index_cast %arg0 : i32 to index
    %c31 = arith.constant 31 : index
    %65 = memref.load %arg3[%64, %c31] : memref<1x46xf32, #tpu.memory_space<smem>>
    %66 = arith.index_cast %arg0 : i32 to index
    %c32 = arith.constant 32 : index
    %67 = memref.load %arg3[%66, %c32] : memref<1x46xf32, #tpu.memory_space<smem>>
    %68 = arith.index_cast %arg0 : i32 to index
    %c33 = arith.constant 33 : index
    %69 = memref.load %arg3[%68, %c33] : memref<1x46xf32, #tpu.memory_space<smem>>
    %70 = arith.index_cast %arg0 : i32 to index
    %c34 = arith.constant 34 : index
    %71 = memref.load %arg3[%70, %c34] : memref<1x46xf32, #tpu.memory_space<smem>>
    %72 = arith.index_cast %arg0 : i32 to index
    %c35 = arith.constant 35 : index
    %73 = memref.load %arg3[%72, %c35] : memref<1x46xf32, #tpu.memory_space<smem>>
    %74 = arith.index_cast %arg0 : i32 to index
    %c36 = arith.constant 36 : index
    %75 = memref.load %arg3[%74, %c36] : memref<1x46xf32, #tpu.memory_space<smem>>
    %76 = arith.index_cast %arg0 : i32 to index
    %c37 = arith.constant 37 : index
    %77 = memref.load %arg3[%76, %c37] : memref<1x46xf32, #tpu.memory_space<smem>>
    %78 = arith.index_cast %arg0 : i32 to index
    %c38 = arith.constant 38 : index
    %79 = memref.load %arg3[%78, %c38] : memref<1x46xf32, #tpu.memory_space<smem>>
    %80 = arith.index_cast %arg0 : i32 to index
    %c39 = arith.constant 39 : index
    %81 = memref.load %arg3[%80, %c39] : memref<1x46xf32, #tpu.memory_space<smem>>
    %82 = arith.index_cast %arg0 : i32 to index
    %c40 = arith.constant 40 : index
    %83 = memref.load %arg3[%82, %c40] : memref<1x46xf32, #tpu.memory_space<smem>>
    %84 = arith.index_cast %arg0 : i32 to index
    %c41 = arith.constant 41 : index
    %85 = memref.load %arg3[%84, %c41] : memref<1x46xf32, #tpu.memory_space<smem>>
    %86 = arith.index_cast %arg0 : i32 to index
    %c42 = arith.constant 42 : index
    %87 = memref.load %arg3[%86, %c42] : memref<1x46xf32, #tpu.memory_space<smem>>
    %88 = arith.index_cast %arg0 : i32 to index
    %c43 = arith.constant 43 : index
    %89 = memref.load %arg3[%88, %c43] : memref<1x46xf32, #tpu.memory_space<smem>>
    %90 = arith.index_cast %arg0 : i32 to index
    %c44 = arith.constant 44 : index
    %91 = memref.load %arg3[%90, %c44] : memref<1x46xf32, #tpu.memory_space<smem>>
    %92 = arith.index_cast %arg0 : i32 to index
    %c45 = arith.constant 45 : index
    %93 = memref.load %arg3[%92, %c45] : memref<1x46xf32, #tpu.memory_space<smem>>
    %94 = tpu.iota {dimensions = array<i32: 1>} : vector<8x16xi32>
    %95 = tpu.iota {dimensions = array<i32: 0>} : vector<8x16xi32>
    %96 = vector.broadcast %1 : i32 to vector<8x16xi32>
    %97 = arith.addi %94, %96 : vector<8x16xi32>
    %98 = arith.sitofp %97 : vector<8x16xi32> to vector<8x16xf32>
    %cst = arith.constant 0.13333334 : f32
    %99 = vector.broadcast %cst : f32 to vector<8x16xf32>
    %100 = arith.mulf %98, %99 : vector<8x16xf32>
    %cst_0 = arith.constant 1.000000e+00 : f32
    %101 = vector.broadcast %cst_0 : f32 to vector<8x16xf32>
    %102 = arith.subf %100, %101 : vector<8x16xf32>
    %103 = arith.sitofp %95 : vector<8x16xi32> to vector<8x16xf32>
    %cst_1 = arith.constant 0.13333334 : f32
    %104 = vector.broadcast %cst_1 : f32 to vector<8x16xf32>
    %105 = arith.mulf %103, %104 : vector<8x16xf32>
    %106 = arith.mulf %102, %102 : vector<8x16xf32>
    %107 = vector.broadcast %85 : f32 to vector<8x16xf32>
    %108 = arith.mulf %107, %102 : vector<8x16xf32>
    %109 = vector.broadcast %83 : f32 to vector<8x16xf32>
    %110 = arith.addf %109, %108 : vector<8x16xf32>
    %111 = vector.broadcast %91 : f32 to vector<8x16xf32>
    %112 = arith.mulf %111, %102 : vector<8x16xf32>
    %113 = vector.broadcast %89 : f32 to vector<8x16xf32>
    %114 = arith.addf %113, %112 : vector<8x16xf32>
    %c0_i32 = arith.constant 0 : i32
    %115 = arith.addi %0, %c0_i32 : i32
    %116 = arith.sitofp %115 : i32 to f32
    %cst_2 = arith.constant 0.13333334 : f32
    %117 = arith.mulf %116, %cst_2 : f32
    %cst_3 = arith.constant 1.000000e+00 : f32
    %118 = arith.subf %117, %cst_3 : f32
    %119 = vector.broadcast %118 : f32 to vector<8x16xf32>
    %120 = arith.addf %105, %119 : vector<8x16xf32>
    %121 = arith.mulf %120, %120 : vector<8x16xf32>
    %122 = arith.addf %106, %121 : vector<8x16xf32>
    %123 = vector.broadcast %87 : f32 to vector<8x16xf32>
    %124 = arith.mulf %123, %120 : vector<8x16xf32>
    %125 = arith.addf %110, %124 : vector<8x16xf32>
    %126 = vector.broadcast %93 : f32 to vector<8x16xf32>
    %127 = arith.mulf %126, %120 : vector<8x16xf32>
    %128 = arith.addf %114, %127 : vector<8x16xf32>
    %129 = vector.broadcast %3 : f32 to vector<8x16xf32>
    %130 = arith.mulf %129, %102 : vector<8x16xf32>
    %131 = arith.addf %122, %130 : vector<8x16xf32>
    %132 = vector.broadcast %19 : f32 to vector<8x16xf32>
    %133 = arith.mulf %132, %120 : vector<8x16xf32>
    %134 = arith.addf %131, %133 : vector<8x16xf32>
    %135 = vector.broadcast %35 : f32 to vector<8x16xf32>
    %136 = arith.addf %134, %135 : vector<8x16xf32>
    %cst_4 = arith.constant 9.99999971E-10 : f32
    %137 = vector.broadcast %cst_4 : f32 to vector<8x16xf32>
    %138 = arith.maximumf %136, %137 : vector<8x16xf32>
    %139 = math.log %138 : vector<8x16xf32>
    %140 = arith.mulf %138, %139 : vector<8x16xf32>
    %141 = vector.broadcast %51 : f32 to vector<8x16xf32>
    %142 = arith.mulf %141, %140 : vector<8x16xf32>
    %143 = arith.addf %125, %142 : vector<8x16xf32>
    %144 = vector.broadcast %67 : f32 to vector<8x16xf32>
    %145 = arith.mulf %144, %140 : vector<8x16xf32>
    %146 = arith.addf %128, %145 : vector<8x16xf32>
    %147 = vector.broadcast %5 : f32 to vector<8x16xf32>
    %148 = arith.mulf %147, %102 : vector<8x16xf32>
    %149 = arith.addf %122, %148 : vector<8x16xf32>
    %150 = vector.broadcast %21 : f32 to vector<8x16xf32>
    %151 = arith.mulf %150, %120 : vector<8x16xf32>
    %152 = arith.addf %149, %151 : vector<8x16xf32>
    %153 = vector.broadcast %37 : f32 to vector<8x16xf32>
    %154 = arith.addf %152, %153 : vector<8x16xf32>
    %cst_5 = arith.constant 9.99999971E-10 : f32
    %155 = vector.broadcast %cst_5 : f32 to vector<8x16xf32>
    %156 = arith.maximumf %154, %155 : vector<8x16xf32>
    %157 = math.log %156 : vector<8x16xf32>
    %158 = arith.mulf %156, %157 : vector<8x16xf32>
    %159 = vector.broadcast %53 : f32 to vector<8x16xf32>
    %160 = arith.mulf %159, %158 : vector<8x16xf32>
    %161 = arith.addf %143, %160 : vector<8x16xf32>
    %162 = vector.broadcast %69 : f32 to vector<8x16xf32>
    %163 = arith.mulf %162, %158 : vector<8x16xf32>
    %164 = arith.addf %146, %163 : vector<8x16xf32>
    %165 = vector.broadcast %7 : f32 to vector<8x16xf32>
    %166 = arith.mulf %165, %102 : vector<8x16xf32>
    %167 = arith.addf %122, %166 : vector<8x16xf32>
    %168 = vector.broadcast %23 : f32 to vector<8x16xf32>
    %169 = arith.mulf %168, %120 : vector<8x16xf32>
    %170 = arith.addf %167, %169 : vector<8x16xf32>
    %171 = vector.broadcast %39 : f32 to vector<8x16xf32>
    %172 = arith.addf %170, %171 : vector<8x16xf32>
    %cst_6 = arith.constant 9.99999971E-10 : f32
    %173 = vector.broadcast %cst_6 : f32 to vector<8x16xf32>
    %174 = arith.maximumf %172, %173 : vector<8x16xf32>
    %175 = math.log %174 : vector<8x16xf32>
    %176 = arith.mulf %174, %175 : vector<8x16xf32>
    %177 = vector.broadcast %55 : f32 to vector<8x16xf32>
    %178 = arith.mulf %177, %176 : vector<8x16xf32>
    %179 = arith.addf %161, %178 : vector<8x16xf32>
    %180 = vector.broadcast %71 : f32 to vector<8x16xf32>
    %181 = arith.mulf %180, %176 : vector<8x16xf32>
    %182 = arith.addf %164, %181 : vector<8x16xf32>
    %183 = vector.broadcast %9 : f32 to vector<8x16xf32>
    %184 = arith.mulf %183, %102 : vector<8x16xf32>
    %185 = arith.addf %122, %184 : vector<8x16xf32>
    %186 = vector.broadcast %25 : f32 to vector<8x16xf32>
    %187 = arith.mulf %186, %120 : vector<8x16xf32>
    %188 = arith.addf %185, %187 : vector<8x16xf32>
    %189 = vector.broadcast %41 : f32 to vector<8x16xf32>
    %190 = arith.addf %188, %189 : vector<8x16xf32>
    %cst_7 = arith.constant 9.99999971E-10 : f32
    %191 = vector.broadcast %cst_7 : f32 to vector<8x16xf32>
    %192 = arith.maximumf %190, %191 : vector<8x16xf32>
    %193 = math.log %192 : vector<8x16xf32>
    %194 = arith.mulf %192, %193 : vector<8x16xf32>
    %195 = vector.broadcast %57 : f32 to vector<8x16xf32>
    %196 = arith.mulf %195, %194 : vector<8x16xf32>
    %197 = arith.addf %179, %196 : vector<8x16xf32>
    %198 = vector.broadcast %73 : f32 to vector<8x16xf32>
    %199 = arith.mulf %198, %194 : vector<8x16xf32>
    %200 = arith.addf %182, %199 : vector<8x16xf32>
    %201 = vector.broadcast %11 : f32 to vector<8x16xf32>
    %202 = arith.mulf %201, %102 : vector<8x16xf32>
    %203 = arith.addf %122, %202 : vector<8x16xf32>
    %204 = vector.broadcast %27 : f32 to vector<8x16xf32>
    %205 = arith.mulf %204, %120 : vector<8x16xf32>
    %206 = arith.addf %203, %205 : vector<8x16xf32>
    %207 = vector.broadcast %43 : f32 to vector<8x16xf32>
    %208 = arith.addf %206, %207 : vector<8x16xf32>
    %cst_8 = arith.constant 9.99999971E-10 : f32
    %209 = vector.broadcast %cst_8 : f32 to vector<8x16xf32>
    %210 = arith.maximumf %208, %209 : vector<8x16xf32>
    %211 = math.log %210 : vector<8x16xf32>
    %212 = arith.mulf %210, %211 : vector<8x16xf32>
    %213 = vector.broadcast %59 : f32 to vector<8x16xf32>
    %214 = arith.mulf %213, %212 : vector<8x16xf32>
    %215 = arith.addf %197, %214 : vector<8x16xf32>
    %216 = vector.broadcast %75 : f32 to vector<8x16xf32>
    %217 = arith.mulf %216, %212 : vector<8x16xf32>
    %218 = arith.addf %200, %217 : vector<8x16xf32>
    %219 = vector.broadcast %13 : f32 to vector<8x16xf32>
    %220 = arith.mulf %219, %102 : vector<8x16xf32>
    %221 = arith.addf %122, %220 : vector<8x16xf32>
    %222 = vector.broadcast %29 : f32 to vector<8x16xf32>
    %223 = arith.mulf %222, %120 : vector<8x16xf32>
    %224 = arith.addf %221, %223 : vector<8x16xf32>
    %225 = vector.broadcast %45 : f32 to vector<8x16xf32>
    %226 = arith.addf %224, %225 : vector<8x16xf32>
    %cst_9 = arith.constant 9.99999971E-10 : f32
    %227 = vector.broadcast %cst_9 : f32 to vector<8x16xf32>
    %228 = arith.maximumf %226, %227 : vector<8x16xf32>
    %229 = math.log %228 : vector<8x16xf32>
    %230 = arith.mulf %228, %229 : vector<8x16xf32>
    %231 = vector.broadcast %61 : f32 to vector<8x16xf32>
    %232 = arith.mulf %231, %230 : vector<8x16xf32>
    %233 = arith.addf %215, %232 : vector<8x16xf32>
    %234 = vector.broadcast %77 : f32 to vector<8x16xf32>
    %235 = arith.mulf %234, %230 : vector<8x16xf32>
    %236 = arith.addf %218, %235 : vector<8x16xf32>
    %237 = vector.broadcast %15 : f32 to vector<8x16xf32>
    %238 = arith.mulf %237, %102 : vector<8x16xf32>
    %239 = arith.addf %122, %238 : vector<8x16xf32>
    %240 = vector.broadcast %31 : f32 to vector<8x16xf32>
    %241 = arith.mulf %240, %120 : vector<8x16xf32>
    %242 = arith.addf %239, %241 : vector<8x16xf32>
    %243 = vector.broadcast %47 : f32 to vector<8x16xf32>
    %244 = arith.addf %242, %243 : vector<8x16xf32>
    %cst_10 = arith.constant 9.99999971E-10 : f32
    %245 = vector.broadcast %cst_10 : f32 to vector<8x16xf32>
    %246 = arith.maximumf %244, %245 : vector<8x16xf32>
    %247 = math.log %246 : vector<8x16xf32>
    %248 = arith.mulf %246, %247 : vector<8x16xf32>
    %249 = vector.broadcast %63 : f32 to vector<8x16xf32>
    %250 = arith.mulf %249, %248 : vector<8x16xf32>
    %251 = arith.addf %233, %250 : vector<8x16xf32>
    %252 = vector.broadcast %79 : f32 to vector<8x16xf32>
    %253 = arith.mulf %252, %248 : vector<8x16xf32>
    %254 = arith.addf %236, %253 : vector<8x16xf32>
    %255 = vector.broadcast %17 : f32 to vector<8x16xf32>
    %256 = arith.mulf %255, %102 : vector<8x16xf32>
    %257 = arith.addf %122, %256 : vector<8x16xf32>
    %258 = vector.broadcast %33 : f32 to vector<8x16xf32>
    %259 = arith.mulf %258, %120 : vector<8x16xf32>
    %260 = arith.addf %257, %259 : vector<8x16xf32>
    %261 = vector.broadcast %49 : f32 to vector<8x16xf32>
    %262 = arith.addf %260, %261 : vector<8x16xf32>
    %cst_11 = arith.constant 9.99999971E-10 : f32
    %263 = vector.broadcast %cst_11 : f32 to vector<8x16xf32>
    %264 = arith.maximumf %262, %263 : vector<8x16xf32>
    %265 = math.log %264 : vector<8x16xf32>
    %266 = arith.mulf %264, %265 : vector<8x16xf32>
    %267 = vector.broadcast %65 : f32 to vector<8x16xf32>
    %268 = arith.mulf %267, %266 : vector<8x16xf32>
    %269 = arith.addf %251, %268 : vector<8x16xf32>
    %270 = vector.broadcast %81 : f32 to vector<8x16xf32>
    %271 = arith.mulf %270, %266 : vector<8x16xf32>
    %272 = arith.addf %254, %271 : vector<8x16xf32>
    %c0_12 = arith.constant 0 : index
    %c0_13 = arith.constant 0 : index
    %c0_14 = arith.constant 0 : index
    %c0_15 = arith.constant 0 : index
    %273 = vector.load %arg4[%c0_12, %c0_13, %c0_14, %c0_15] : memref<1x2x8x16xf32, #tpu.memory_space<vmem>>, vector<1x1x8x16xf32>
    %274 = vector.shape_cast %273 : vector<1x1x8x16xf32> to vector<8x16xf32>
    %275 = vector.shape_cast %269 : vector<8x16xf32> to vector<1x1x8x16xf32>
    tpu.vector_store %arg4[%c0_12, %c0_13, %c0_14, %c0_15], %275 {strides = array<i32>} : memref<1x2x8x16xf32, #tpu.memory_space<vmem>>, vector<1x1x8x16xf32>,
    %c0_16 = arith.constant 0 : index
    %c1_17 = arith.constant 1 : index
    %c0_18 = arith.constant 0 : index
    %c0_19 = arith.constant 0 : index
    %276 = vector.load %arg4[%c0_16, %c1_17, %c0_18, %c0_19] : memref<1x2x8x16xf32, #tpu.memory_space<vmem>>, vector<1x1x8x16xf32>
    %277 = vector.shape_cast %276 : vector<1x1x8x16xf32> to vector<8x16xf32>
    %278 = vector.shape_cast %272 : vector<8x16xf32> to vector<1x1x8x16xf32>
    tpu.vector_store %arg4[%c0_16, %c1_17, %c0_18, %c0_19], %278 {strides = array<i32>} : memref<1x2x8x16xf32, #tpu.memory_space<vmem>>, vector<1x1x8x16xf32>,
    return
  }
  func.func @transform_0(%arg0: i32, %arg1: i32, %arg2: i32) -> (i32, i32) {
    %c0_i32 = arith.constant 0 : i32
    %c0_i32_0 = arith.constant 0 : i32
    %c0_i32_1 = arith.constant 0 : i32
    return %c0_i32, %c0_i32_0 : i32, i32
  }
  func.func @transform_1(%arg0: i32, %arg1: i32, %arg2: i32) -> (i32, i32, i32, i32) {
    %c0_i32 = arith.constant 0 : i32
    %c0_i32_0 = arith.constant 0 : i32
    return %arg0, %c0_i32, %arg1, %arg2 : i32, i32, i32, i32
  }
}

</mosaic_0001>

<llo_original>
// kernel: custom-call.8
$region0: #{custom-call.8}
  %s0 = inlined_call_operand.vmem [shape: f32[11,11], index: 0, kind: input, shape index: {}]
  %s1 = inlined_call_operand.vmem [shape: f32[11,11], index: 1, kind: output, shape index: {0}]
  %s2 = inlined_call_operand.hbm [shape: s32[11], index: 2, kind: output, shape index: {1}]
  %s3 = inlined_call_operand.vmem [shape: s32[11], index: 3, kind: output, shape index: {2}]
  %4 = xla_tuple %s1, %s2, %s3
  $region1: #{custom-call.8} parent=0
    #allocation0 [shape = 'u8[8192]{0}', space=vmem, size = 0x2000, scoped, tag = 'operand span for operand 0']
    #allocation1 [shape = 'u8[8192]{0}', space=vmem, size = 0x2000, scoped, tag = 'operand span for operand 1']
    #allocation2 [shape = 'u8[4096]{0}', space=vmem, size = 0x1000, scoped, tag = 'operand span for operand 2']
    #allocation3 [shape = 'u8[512]{0}', space=vmem, size = 0x400, scoped, tag = 'packed  for operand 2']
    #allocation4 [shape = 's32[1]{0}', space=sflag, size = 0x4, scoped, tag = 'scoped memory for custom-call.8']
    #allocation5 [shape = 'u8[4096]{0}', space=vmem, size = 0x1000, scoped, tag = 'operand span for operand 3']
    #allocation6 [shape = 'u8[512]{0}', space=vmem, size = 0x400, scoped, tag = 'packed  for operand 3']
    #allocation7 [shape = 's32[11,128]{1,0}', space=vmem, size = 0x2000, scoped, tag = 'scratch for permutations']
    %5 = vsyncpa [#allocation4], 0
    %p7 = scmp.gt.s32.totalorder 16, 0
    // Predicated region
    $region2: #{custom-call.8} parent=1 // pred_check
      %p8 = pneg %p7
    $region3: #{custom-call.8} parent=1 // pred_check_branch
      %10 = sbr.rel (%p8) target = $region5
    $region4: #{custom-call.8} parent=1 // pred_region
      %s11 = sshra.s32 16, 3
      %p12 = scmp.gt.s32.totalorder %s11, 0
      // Predicated region
      $region6: #{custom-call.8} parent=4 // pred_check
        %p13 = pneg %p12
      $region7: #{custom-call.8} parent=4 // pred_check_branch
        %15 = sbr.rel (%p13) target = $region9
      $region8: #{custom-call.8} parent=4 // pred_region
        %s16 = ssub.s32 %s11, 1
        %s17 = smul.u32 %s16, 128
        %s18 = sshra.s32 %s17, 4
        %s19 = scalar_lea.vmem %s0, %s18
        %v20 = vld [vmem:[%s0] sm:$0xff]
        // While loop
        $region10: #{custom-call.8} parent=8 // loop_pre_header
          _
        $region11: #{custom-call.8} parent=8 // loop_header
          %s21 = sphi %s0, %s43
          %s22 = sphi [#allocation0], %s44
          %v23 = vphi %v20, %v45
          %s24 = ssub.s32 %s19, 64
          %p25 = scmp.gt.s32.totalorder %s21, %s24
        $region12: #{custom-call.8} parent=8 // loop_header_branch
          %27 = sbr.rel (%p25) target = $region16
        $region13: #{custom-call.8} parent=8 // loop_body
          %28 = vst [vmem:[%s22] sm:$0xff] %v23
          %v29 = vld [vmem:[%s21 + $0x8] sm:$0xff]
          %30 = vst [vmem:[%s22 + $0x8] sm:$0xff] %v29
          %v31 = vld [vmem:[%s21 + $0x10] sm:$0xff]
          %32 = vst [vmem:[%s22 + $0x10] sm:$0xff] %v31
          %v33 = vld [vmem:[%s21 + $0x18] sm:$0xff]
          %34 = vst [vmem:[%s22 + $0x18] sm:$0xff] %v33
          %v35 = vld [vmem:[%s21 + $0x20] sm:$0xff]
          %36 = vst [vmem:[%s22 + $0x20] sm:$0xff] %v35
          %v37 = vld [vmem:[%s21 + $0x28] sm:$0xff]
          %38 = vst [vmem:[%s22 + $0x28] sm:$0xff] %v37
          %v39 = vld [vmem:[%s21 + $0x30] sm:$0xff]
          %40 = vst [vmem:[%s22 + $0x30] sm:$0xff] %v39
          %v41 = vld [vmem:[%s21 + $0x38] sm:$0xff]
          %42 = vst [vmem:[%s22 + $0x38] sm:$0xff] %v41
        $region14: #{custom-call.8} parent=8 // loop_footer
          %s43 = scalar_lea.vmem %s21, 64
          %s44 = scalar_lea.vmem %s22, 64
          %v45 = vld [vmem:[%s21 + $0x40] sm:$0xff]
        $region15: #{custom-call.8} parent=8 // loop_footer_branch
          %46 = sbr.rel target = $region11
        $region16: #{custom-call.8} parent=8 // loop_exit
          _
        // While loop
        $region17: #{custom-call.8} parent=8 // loop_pre_header
          _
        $region18: #{custom-call.8} parent=8 // loop_header
          %s47 = sphi %s21, %s55
          %s48 = sphi %s22, %s56
          %v49 = vphi %v23, %v49
          %p50 = scmp.gt.s32.totalorder %s47, %s19
        $region19: #{custom-call.8} parent=8 // loop_header_branch
          %52 = sbr.rel (%p50) target = $region23
        $region20: #{custom-call.8} parent=8 // loop_body
          %v53 = vld [vmem:[%s47] sm:$0xff]
          %54 = vst [vmem:[%s48] sm:$0xff] %v53
        $region21: #{custom-call.8} parent=8 // loop_footer
          %s55 = scalar_lea.vmem %s47, 8
          %s56 = scalar_lea.vmem %s48, 8
        $region22: #{custom-call.8} parent=8 // loop_footer_branch
          %57 = sbr.rel target = $region18
        $region23: #{custom-call.8} parent=8 // loop_exit
          _
      $region9: #{custom-call.8} parent=4 // pred_fallthru
        _
      %s58 = sand.u32 16, 7
      %s59 = sshll.u32 1, %s58
      %s60 = ssub.s32 %s59, 1
      %s61 = smul.u32 %s11, 128
      %s62 = sshra.s32 %s61, 4
      %s63 = scalar_lea.vmem [#allocation0], %s62
      %s64 = smul.u32 %s11, 128
      %s65 = sshra.s32 %s64, 4
      %s66 = scalar_lea.vmem %s0, %s65
      %v67 = vld [vmem:[%s66] sm:%s60]
      %68 = vst [vmem:[%s63] sm:%s60] %v67
    $region5: #{custom-call.8} parent=1 // pred_fallthru
      _
    %v69 = vld [vmem:[#allocation0] sm:$0xff]
    %70 = vst [vmem:[#allocation1] sm:$0xff] %v69
    %s71 = scalar_lea.vmem [#allocation1], 8
    %s72 = scalar_lea.vmem [#allocation0], 8
    %v73 = vld [vmem:[%s72] sm:$0xff]
    %74 = vst [vmem:[%s71] sm:$0xff] %v73
    %75 = vst [vmem:[#allocation2] sm:$0x1] 0
    %v76 = vlaneseq
    %v77 = vshrl.u32 %v76, 7
    %v78 = vmov %v77
    loop: start=0, step=1, limit=2
    $region24: #{custom-call.8} parent=1 // loop_pre_header
      _
    $region25: #{custom-call.8} parent=1 // loop_header
      %s80 = sphi 0, %s84
      %p81 = scmp.ge.s32.totalorder %s80, 2
    $region26: #{custom-call.8} parent=1 // loop_header_branch
      %83 = sbr.rel (%p81) target = $region30
    $region27: #{custom-call.8} parent=1 // loop_body
      %s85 = smul.addr %s80, 8
      %s86 = scalar_lea.vmem [#allocation7], %s85
      %s87 = smul.u32 %s80, 8
      %v88 = vstv %s87
      %v89 = vadd.s32 %v78, %v88
      %90 = vst [vmem:[%s86] sm:$0xff] %v89
    $region28: #{custom-call.8} parent=1 // loop_footer
      %s84 = sadd.s32 1, %s80
    $region29: #{custom-call.8} parent=1 // loop_footer_branch
      %79 = sbr.rel target = $region25
    $region30: #{custom-call.8} parent=1 // loop_exit
      _
    loop: start=0, step=1, limit=11
    $region31: #{custom-call.8} parent=1 // loop_pre_header
      _
    $region32: #{custom-call.8} parent=1 // loop_header
      %s92 = sphi 0, %s96
      %p93 = scmp.ge.s32.totalorder %s92, 11
    $region33: #{custom-call.8} parent=1 // loop_header_branch
      %95 = sbr.rel (%p93) target = $region37
    $region34: #{custom-call.8} parent=1 // loop_body
      %v97 = vstv %s92
      %v98 = vlaneseq
      %v99 = vshrl.u32 %v98, 7
      %v100 = vmov %v99
      %v101 = vld [vmem:[#allocation1] sm:$0xff]
      %v102 = vand.u32 2147483647, %v101
      %v104 = vstv %s92
      %vm105 = vcmp.ge.s32.totalorder %v100, %v104
      %vm106 = vcmp.lt.s32.totalorder %v100, 11
      %vm107 = vmand %vm105, %vm106
      %vm108 = vcmp.lt.f32.partialorder -inf, %v102
      %vm109 = vmand %vm107, %vm108
      %v110 = vsel %vm109, %v100, %v97
      %v111 = vsel %vm109, %v102, -inf
      %s112 = scalar_lea.vmem [#allocation1], 8
      %v113 = vld [vmem:[%s112] sm:$0xff]
      %v114 = vand.u32 2147483647, %v113
      %v115 = vadd.s32 %v100, 8
      %v116 = vstv %s92
      %vm117 = vcmp.ge.s32.totalorder %v115, %v116
      %vm118 = vcmp.lt.s32.totalorder %v115, 11
      %vm119 = vmand %vm117, %vm118
      %vm120 = vcmp.lt.f32.partialorder %v111, %v114
      %vm121 = vmand %vm119, %vm120
      %v122 = vsel %vm121, %v115, %v110
      %v123 = vsel %vm121, %v114, %v111
      %v124 = vrot.slane %v123, 1
      %v125 = vrot.slane %v122, 1
      %vm126 = vcmp.ge.f32.partialorder %v124, %v123
      %v127 = vsel %vm126, %v124, %v123
      %v128 = vsel %vm126, %v125, %v122
      %v129 = vrot.slane %v124, 1
      %v130 = vrot.slane %v125, 1
      %vm131 = vcmp.ge.f32.partialorder %v129, %v127
      %v132 = vsel %vm131, %v129, %v127
      %v133 = vsel %vm131, %v130, %v128
      %v134 = vrot.slane %v129, 1
      %v135 = vrot.slane %v130, 1
      %vm136 = vcmp.ge.f32.partialorder %v134, %v132
      %v137 = vsel %vm136, %v134, %v132
      %v138 = vsel %vm136, %v135, %v133
      %v139 = vrot.slane %v134, 1
      %v140 = vrot.slane %v135, 1
      %vm141 = vcmp.ge.f32.partialorder %v139, %v137
      %v142 = vsel %vm141, %v139, %v137
      %v143 = vsel %vm141, %v140, %v138
      %v144 = vrot.slane %v139, 1
      %v145 = vrot.slane %v140, 1
      %vm146 = vcmp.ge.f32.partialorder %v144, %v142
      %v147 = vsel %vm146, %v144, %v142
      %v148 = vsel %vm146, %v145, %v143
      %v149 = vrot.slane %v144, 1
      %v150 = vrot.slane %v145, 1
      %vm151 = vcmp.ge.f32.partialorder %v149, %v147
      %v152 = vsel %vm151, %v149, %v147
      %v153 = vsel %vm151, %v150, %v148
      %v154 = vrot.slane %v149, 1
      %v155 = vrot.slane %v150, 1
      %vm156 = vcmp.ge.f32.partialorder %v154, %v152
      %v157 = vsel %vm156, %v154, %v152
      %v158 = vsel %vm156, %v155, %v153
      %s159 = ssub.s32 128, %s92
      %160 = vrot.lane.b32.xlu0 %v158, %s159
      %v161 = vpop.permute.xlu0 %160
      %s162 = vtos %v161
      %v163 = vstv %s92
      %v164 = vlaneseq
      %v165 = vand.u32 %v164, 127
      %vm166 = vcmp.eq.s32.totalorder %v165, %v163
      %v167 = vstv %s162
      %v168 = vld [vmem:[#allocation2] ss:$0 sm:$0xff]
      %v169 = vsel %vm166, %v167, %v168
      %170 = vst [vmem:[#allocation2] sm:$0x1] %v169
      %s171 = scalar_lea.vmem [#allocation1], %s92
      %s172 = scalar_lea.vmem [#allocation1], %s162
      %v173 = vld [vmem:[%s171] ss:$0 sm:$0xff]
      %v174 = vld [vmem:[%s172] ss:$0 sm:$0xff]
      %175 = vst [vmem:[%s172] sm:$0x1] %v173
      %176 = vst [vmem:[%s171] sm:$0x1] %v174
      %s177 = scalar_lea.vmem [#allocation7], %s92
      %s178 = scalar_lea.vmem [#allocation7], %s162
      %v179 = vld [vmem:[%s177] ss:$0 sm:$0xff]
      %v180 = vld [vmem:[%s178] ss:$0 sm:$0xff]
      %181 = vst [vmem:[%s178] sm:$0x1] %v179
      %182 = vst [vmem:[%s177] sm:$0x1] %v180
      %vm183 = vcmp.ne.f32.partialorder %v174, 0.0
      %vm184 = vmand %vm166, %vm183
      %v185 = vsel %vm184, %v174, 1.0
      %v186 = vlaneseq
      %v187 = vand.u32 %v186, 127
      %v188 = vstv %s92
      %vm189 = vcmp.gt.s32.totalorder %v187, %v188
      %v190 = vsel %vm189, %v174, 0.0
      %v191 = vlaneseq
      %v192 = vshrl.u32 %v191, 7
      %v193 = vmov %v192
      %v194 = vld [vmem:[#allocation1] sm:$0xff]
      %v196 = vstv %s92
      %vm197 = vcmp.gt.s32.totalorder %v193, %v196
      %v198 = vsel %vm197, %v185, 1.0
      %v199 = vrcp.pop %v198
      %v200 = vmul.f32 %v194, %v199
      %vm201 = vmand %vm197, %vm166
      %v202 = vsel %vm201, %v200, 0.0
      %203 = vadd.xlane.f32.xlu0 %v202
      %v204 = vpop.xlane.xlu0 %203
      %v205 = vmul.f32 %v204, %v190
      %v206 = vsub.f32 %v200, %v205
      %207 = vst [vmem:[#allocation1] sm:$0xff] %v206
      %s208 = scalar_lea.vmem [#allocation1], 8
      %v209 = vld [vmem:[%s208] sm:$0xff]
      %v210 = vadd.s32 %v193, 8
      %v211 = vstv %s92
      %vm212 = vcmp.gt.s32.totalorder %v210, %v211
      %v213 = vsel %vm212, %v185, 1.0
      %v214 = vrcp.pop %v213
      %v215 = vmul.f32 %v209, %v214
      %vm216 = vmand %vm212, %vm166
      %v217 = vsel %vm216, %v215, 0.0
      %218 = vadd.xlane.f32.xlu0 %v217
      %v219 = vpop.xlane.xlu0 %218
      %v220 = vmul.f32 %v219, %v190
      %v221 = vsub.f32 %v215, %v220
      %222 = vst [vmem:[%s208] sm:$0xff] %v221
    $region35: #{custom-call.8} parent=1 // loop_footer
      %s96 = sadd.s32 1, %s92
    $region36: #{custom-call.8} parent=1 // loop_footer_branch
      %91 = sbr.rel target = $region32
    $region37: #{custom-call.8} parent=1 // loop_exit
      _
    %v223 = vld [vmem:[#allocation7] sm:$0xff]
    %s224 = scalar_lea.vmem [#allocation7], 8
    %v225 = vld [vmem:[%s224] sm:$0xff]
    %s226 = scalar_lea.vmem [#allocation7], 16
    %s227 = scalar_lea.vmem [#allocation7], 24
    %s228 = scalar_lea.vmem [#allocation7], 32
    %s229 = scalar_lea.vmem [#allocation7], 40
    %s230 = scalar_lea.vmem [#allocation7], 48
    %s231 = scalar_lea.vmem [#allocation7], 56
    %s232 = scalar_lea.vmem [#allocation7], 64
    %s233 = scalar_lea.vmem [#allocation7], 72
    %s234 = scalar_lea.vmem [#allocation7], 80
    %s235 = scalar_lea.vmem [#allocation7], 88
    %s236 = scalar_lea.vmem [#allocation7], 96
    %s237 = scalar_lea.vmem [#allocation7], 104
    %s238 = scalar_lea.vmem [#allocation7], 112
    %s239 = scalar_lea.vmem [#allocation7], 120
    %240 = vxpose.xlu0.b32.start [1/16] %v223, 128
    %241 = vxpose.xlu0.b32.cont [2/16] %v225, 128
    %242 = vxpose.xlu0.b32.cont [3/16] 0, 128
    %243 = vxpose.xlu0.b32.cont [4/16] 0, 128
    %244 = vxpose.xlu0.b32.cont [5/16] 0, 128
    %245 = vxpose.xlu0.b32.cont [6/16] 0, 128
    %246 = vxpose.xlu0.b32.cont [7/16] 0, 128
    %247 = vxpose.xlu0.b32.cont [8/16] 0, 128
    %248 = vxpose.xlu0.b32.cont [9/16] 0, 128
    %249 = vxpose.xlu0.b32.cont [10/16] 0, 128
    %250 = vxpose.xlu0.b32.cont [11/16] 0, 128
    %251 = vxpose.xlu0.b32.cont [12/16] 0, 128
    %252 = vxpose.xlu0.b32.cont [13/16] 0, 128
    %253 = vxpose.xlu0.b32.cont [14/16] 0, 128
    %254 = vxpose.xlu0.b32.cont [15/16] 0, 128
    %255 = vxpose.xlu0.b32.end [16/16] 0, 128
    %v256 = vpop.trf.xlu0
    %v257 = vpop.trf.xlu0
    %v258 = vpop.trf.xlu0
    %v259 = vpop.trf.xlu0
    %v260 = vpop.trf.xlu0
    %v261 = vpop.trf.xlu0
    %v262 = vpop.trf.xlu0
    %v263 = vpop.trf.xlu0
    %v264 = vpop.trf.xlu0
    %v265 = vpop.trf.xlu0
    %v266 = vpop.trf.xlu0
    %v267 = vpop.trf.xlu0
    %v268 = vpop.trf.xlu0
    %v269 = vpop.trf.xlu0
    %v270 = vpop.trf.xlu0
    %v271 = vpop.trf.xlu0
    %272 = vst [vmem:[#allocation5] sm:$0x1] %v256
    %s274 = sshll.u32 1, 1
    %s275 = ssub.s32 %s274, 1
    %v277 = vld [vmem:[#allocation2] sm:%s275]
    %s278 = sshll.u32 1, 1
    %s279 = ssub.s32 %s278, 1
    %280 = vst [vmem:[#allocation3] sm:%s279] %v277
    %s282 = sshll.u32 1, 1
    %s283 = ssub.s32 %s282, 1
    %v285 = vld [vmem:[#allocation5] sm:%s283]
    %s286 = sshll.u32 1, 1
    %s287 = ssub.s32 %s286, 1
    %288 = vst [vmem:[#allocation6] sm:%s287] %v285
    %p290 = scmp.gt.s32.totalorder 16, 0
    // Predicated region
    $region38: #{custom-call.8} parent=1 // pred_check
      %p291 = pneg %p290
    $region39: #{custom-call.8} parent=1 // pred_check_branch
      %293 = sbr.rel (%p291) target = $region41
    $region40: #{custom-call.8} parent=1 // pred_region
      %s294 = sshra.s32 16, 3
      %p295 = scmp.gt.s32.totalorder %s294, 0
      // Predicated region
      $region42: #{custom-call.8} parent=40 // pred_check
        %p296 = pneg %p295
      $region43: #{custom-call.8} parent=40 // pred_check_branch
        %298 = sbr.rel (%p296) target = $region45
      $region44: #{custom-call.8} parent=40 // pred_region
        %s299 = ssub.s32 %s294, 1
        %s300 = smul.u32 %s299, 128
        %s301 = sshra.s32 %s300, 4
        %s302 = scalar_lea.vmem [#allocation1], %s301
        %v303 = vld [vmem:[#allocation1] sm:$0xff]
        // While loop
        $region46: #{custom-call.8} parent=44 // loop_pre_header
          _
        $region47: #{custom-call.8} parent=44 // loop_header
          %s304 = sphi [#allocation1], %s326
          %s305 = sphi %s1, %s327
          %v306 = vphi %v303, %v328
          %s307 = ssub.s32 %s302, 64
          %p308 = scmp.gt.s32.totalorder %s304, %s307
        $region48: #{custom-call.8} parent=44 // loop_header_branch
          %310 = sbr.rel (%p308) target = $region52
        $region49: #{custom-call.8} parent=44 // loop_body
          %311 = vst [vmem:[%s305] sm:$0xff] %v306
          %v312 = vld [vmem:[%s304 + $0x8] sm:$0xff]
          %313 = vst [vmem:[%s305 + $0x8] sm:$0xff] %v312
          %v314 = vld [vmem:[%s304 + $0x10] sm:$0xff]
          %315 = vst [vmem:[%s305 + $0x10] sm:$0xff] %v314
          %v316 = vld [vmem:[%s304 + $0x18] sm:$0xff]
          %317 = vst [vmem:[%s305 + $0x18] sm:$0xff] %v316
          %v318 = vld [vmem:[%s304 + $0x20] sm:$0xff]
          %319 = vst [vmem:[%s305 + $0x20] sm:$0xff] %v318
          %v320 = vld [vmem:[%s304 + $0x28] sm:$0xff]
          %321 = vst [vmem:[%s305 + $0x28] sm:$0xff] %v320
          %v322 = vld [vmem:[%s304 + $0x30] sm:$0xff]
          %323 = vst [vmem:[%s305 + $0x30] sm:$0xff] %v322
          %v324 = vld [vmem:[%s304 + $0x38] sm:$0xff]
          %325 = vst [vmem:[%s305 + $0x38] sm:$0xff] %v324
        $region50: #{custom-call.8} parent=44 // loop_footer
          %s326 = scalar_lea.vmem %s304, 64
          %s327 = scalar_lea.vmem %s305, 64
          %v328 = vld [vmem:[%s304 + $0x40] sm:$0xff]
        $region51: #{custom-call.8} parent=44 // loop_footer_branch
          %329 = sbr.rel target = $region47
        $region52: #{custom-call.8} parent=44 // loop_exit
          _
        // While loop
        $region53: #{custom-call.8} parent=44 // loop_pre_header
          _
        $region54: #{custom-call.8} parent=44 // loop_header
          %s330 = sphi %s304, %s338
          %s331 = sphi %s305, %s339
          %v332 = vphi %v306, %v332
          %p333 = scmp.gt.s32.totalorder %s330, %s302
        $region55: #{custom-call.8} parent=44 // loop_header_branch
          %335 = sbr.rel (%p333) target = $region59
        $region56: #{custom-call.8} parent=44 // loop_body
          %v336 = vld [vmem:[%s330] sm:$0xff]
          %337 = vst [vmem:[%s331] sm:$0xff] %v336
        $region57: #{custom-call.8} parent=44 // loop_footer
          %s338 = scalar_lea.vmem %s330, 8
          %s339 = scalar_lea.vmem %s331, 8
        $region58: #{custom-call.8} parent=44 // loop_footer_branch
          %340 = sbr.rel target = $region54
        $region59: #{custom-call.8} parent=44 // loop_exit
          _
      $region45: #{custom-call.8} parent=40 // pred_fallthru
        _
      %s341 = sand.u32 16, 7
      %s342 = sshll.u32 1, %s341
      %s343 = ssub.s32 %s342, 1
      %s344 = smul.u32 %s294, 128
      %s345 = sshra.s32 %s344, 4
      %s346 = scalar_lea.vmem %s1, %s345
      %s347 = smul.u32 %s294, 128
      %s348 = sshra.s32 %s347, 4
      %s349 = scalar_lea.vmem [#allocation1], %s348
      %v350 = vld [vmem:[%s349] sm:%s343]
      %351 = vst [vmem:[%s346] sm:%s343] %v350
    $region41: #{custom-call.8} parent=1 // pred_fallthru
      _
    // Predicated region
    $region60: #{custom-call.8} parent=1 // pred_check
      _
    $region61: #{custom-call.8} parent=1 // pred_check_branch
      %353 = sbr.rel (0) target = $region63
    $region62: #{custom-call.8} parent=1 // pred_region
      %s355 = ssub.s32 16, 16
      %356 = vsyncadd [#allocation4], %s355
      %s357 = sshll.u32 [#allocation3], 4
      %s358 = int_to_ptr.vmem [resolvable:$true] %s357
      %360 = dma.vmem_to_hbm [thread:$0]  %s358, 16, %s2, [#allocation4]
    $region63: #{custom-call.8} parent=1 // pred_fallthru
      _
    // Predicated region
    $region64: #{custom-call.8} parent=1 // pred_check
      _
    $region65: #{custom-call.8} parent=1 // pred_check_branch
      %362 = sbr.rel (0) target = $region67
    $region66: #{custom-call.8} parent=1 // pred_region
      %p364 = scmp.gt.s32.totalorder 1, 0
      // Predicated region
      $region68: #{custom-call.8} parent=66 // pred_check
        %p365 = pneg %p364
      $region69: #{custom-call.8} parent=66 // pred_check_branch
        %367 = sbr.rel (%p365) target = $region71
      $region70: #{custom-call.8} parent=66 // pred_region
        %s368 = sshra.s32 1, 3
        %p369 = scmp.gt.s32.totalorder %s368, 0
        // Predicated region
        $region72: #{custom-call.8} parent=70 // pred_check
          %p370 = pneg %p369
        $region73: #{custom-call.8} parent=70 // pred_check_branch
          %372 = sbr.rel (%p370) target = $region75
        $region74: #{custom-call.8} parent=70 // pred_region
          %s373 = ssub.s32 %s368, 1
          %s374 = smul.u32 %s373, 128
          %s375 = sshra.s32 %s374, 4
          %s376 = scalar_lea.vmem [#allocation6], %s375
          %v377 = vld [vmem:[#allocation6] sm:$0xff]
          // While loop
          $region76: #{custom-call.8} parent=74 // loop_pre_header
            _
          $region77: #{custom-call.8} parent=74 // loop_header
            %s378 = sphi [#allocation6], %s400
            %s379 = sphi %s3, %s401
            %v380 = vphi %v377, %v402
            %s381 = ssub.s32 %s376, 64
            %p382 = scmp.gt.s32.totalorder %s378, %s381
          $region78: #{custom-call.8} parent=74 // loop_header_branch
            %384 = sbr.rel (%p382) target = $region82
          $region79: #{custom-call.8} parent=74 // loop_body
            %385 = vst [vmem:[%s379] sm:$0xff] %v380
            %v386 = vld [vmem:[%s378 + $0x8] sm:$0xff]
            %387 = vst [vmem:[%s379 + $0x8] sm:$0xff] %v386
            %v388 = vld [vmem:[%s378 + $0x10] sm:$0xff]
            %389 = vst [vmem:[%s379 + $0x10] sm:$0xff] %v388
            %v390 = vld [vmem:[%s378 + $0x18] sm:$0xff]
            %391 = vst [vmem:[%s379 + $0x18] sm:$0xff] %v390
            %v392 = vld [vmem:[%s378 + $0x20] sm:$0xff]
            %393 = vst [vmem:[%s379 + $0x20] sm:$0xff] %v392
            %v394 = vld [vmem:[%s378 + $0x28] sm:$0xff]
            %395 = vst [vmem:[%s379 + $0x28] sm:$0xff] %v394
            %v396 = vld [vmem:[%s378 + $0x30] sm:$0xff]
            %397 = vst [vmem:[%s379 + $0x30] sm:$0xff] %v396
            %v398 = vld [vmem:[%s378 + $0x38] sm:$0xff]
            %399 = vst [vmem:[%s379 + $0x38] sm:$0xff] %v398
          $region80: #{custom-call.8} parent=74 // loop_footer
            %s400 = scalar_lea.vmem %s378, 64
            %s401 = scalar_lea.vmem %s379, 64
            %v402 = vld [vmem:[%s378 + $0x40] sm:$0xff]
          $region81: #{custom-call.8} parent=74 // loop_footer_branch
            %403 = sbr.rel target = $region77
          $region82: #{custom-call.8} parent=74 // loop_exit
            _
          // While loop
          $region83: #{custom-call.8} parent=74 // loop_pre_header
            _
          $region84: #{custom-call.8} parent=74 // loop_header
            %s404 = sphi %s378, %s412
            %s405 = sphi %s379, %s413
            %v406 = vphi %v380, %v406
            %p407 = scmp.gt.s32.totalorder %s404, %s376
          $region85: #{custom-call.8} parent=74 // loop_header_branch
            %409 = sbr.rel (%p407) target = $region89
          $region86: #{custom-call.8} parent=74 // loop_body
            %v410 = vld [vmem:[%s404] sm:$0xff]
            %411 = vst [vmem:[%s405] sm:$0xff] %v410
          $region87: #{custom-call.8} parent=74 // loop_footer
            %s412 = scalar_lea.vmem %s404, 8
            %s413 = scalar_lea.vmem %s405, 8
          $region88: #{custom-call.8} parent=74 // loop_footer_branch
            %414 = sbr.rel target = $region84
          $region89: #{custom-call.8} parent=74 // loop_exit
            _
        $region75: #{custom-call.8} parent=70 // pred_fallthru
          _
        %s415 = sand.u32 1, 7
        %s416 = sshll.u32 1, %s415
        %s417 = ssub.s32 %s416, 1
        %s418 = smul.u32 %s368, 128
        %s419 = sshra.s32 %s418, 4
        %s420 = scalar_lea.vmem %s3, %s419
        %s421 = smul.u32 %s368, 128
        %s422 = sshra.s32 %s421, 4
        %s423 = scalar_lea.vmem [#allocation6], %s422
        %v424 = vld [vmem:[%s423] sm:%s417]
        %425 = vst [vmem:[%s420] sm:%s417] %v424
      $region71: #{custom-call.8} parent=66 // pred_fallthru
        _
    $region67: #{custom-call.8} parent=1 // pred_fallthru
      _
    // Predicated region
    $region90: #{custom-call.8} parent=1 // pred_check
      _
    $region91: #{custom-call.8} parent=1 // pred_check_branch
      %427 = sbr.rel (0) target = $region93
    $region92: #{custom-call.8} parent=1 // pred_region
      %428 = dma.done [#allocation4], 16
    $region93: #{custom-call.8} parent=1 // pred_fallthru
      _
    // Predicated region
    $region94: #{custom-call.8} parent=1 // pred_check
      _
    $region95: #{custom-call.8} parent=1 // pred_check_branch
      %430 = sbr.rel (0) target = $region97
    $region96: #{custom-call.8} parent=1 // pred_region
      _
    $region97: #{custom-call.8} parent=1 // pred_fallthru
      _
    %431 = vsyncpa [#allocation4], 1

// kernel: custom-call.9
$region0: #{custom-call.9}
  %s0 = inlined_call_operand.vmem [shape: f32[1,11,11], index: 0, kind: input, shape index: {}]
  %s1 = inlined_call_operand.vmem [shape: f32[1,11,11], index: 1, kind: output, shape index: {}]
  $region1: #{custom-call.9} parent=0
    #allocation0 [shape = 'u8[8192]{0}', space=vmem, size = 0x2000, scoped, tag = 'operand span for operand 0']
    #allocation1 [shape = 'u8[8192]{0}', space=vmem, size = 0x2000, scoped, tag = 'operand span for operand 1']
    #allocation2 [shape = 'f32[11,11]{1,0}', space=vmem, size = 0x2000, scoped, tag = 'rescaled input a']
    // Predicated region
    $region2: #{custom-call.9} parent=1 // pred_check
      _
    $region3: #{custom-call.9} parent=1 // pred_check_branch
      %3 = sbr.rel (0) target = $region5
    $region4: #{custom-call.9} parent=1 // pred_region
      // Predicated region
      $region6: #{custom-call.9} parent=4 // pred_check
        _
      $region7: #{custom-call.9} parent=4 // pred_check_branch
        %5 = sbr.rel (0) target = $region9
      $region8: #{custom-call.9} parent=4 // pred_region
        // Predicated region
        $region21: #{custom-call.9} parent=8 // pred_check
          _
        $region22: #{custom-call.9} parent=8 // pred_check_branch
          %23 = sbr.rel (0) target = $region24
        $region23: #{custom-call.9} parent=8 // pred_region
          loop: start=0, step=1, limit=1
          $region25: #{custom-call.9} parent=23 // loop_pre_header
            _
          $region26: #{custom-call.9} parent=23 // loop_header
            %s25 = sphi 0, %s29
            %p26 = scmp.ge.s32.totalorder %s25, 1
            %s30 = sphi %s0, %s0
            %s31 = sphi [#allocation0], [#allocation0]
          $region27: #{custom-call.9} parent=23 // loop_header_branch
            %28 = sbr.rel (%p26) target = $region31
          $region28: #{custom-call.9} parent=23 // loop_body
            %v32 = vld [vmem:[%s30] sm:$0xff]
            %33 = vst [vmem:[%s31] sm:$0xff] %v32
            %v34 = vld [vmem:[%s30 + $0x8] sm:$0xff]
            %35 = vst [vmem:[%s31 + $0x8] sm:$0xff] %v34
          $region29: #{custom-call.9} parent=23 // loop_footer
            %s29 = sadd.s32 1, %s25
          $region30: #{custom-call.9} parent=23 // loop_footer_branch
            %24 = sbr.rel target = $region26
          $region31: #{custom-call.9} parent=23 // loop_exit
            _
        $region24: #{custom-call.9} parent=8 // pred_fallthru
          _
        // Predicated region
        $region32: #{custom-call.9} parent=8 // pred_check
          _
        $region33: #{custom-call.9} parent=8 // pred_check_branch
          %37 = sbr.rel target = $region35
        $region34: #{custom-call.9} parent=8 // pred_region
          _
        $region35: #{custom-call.9} parent=8 // pred_fallthru
          _
      $region9: #{custom-call.9} parent=4 // pred_fallthru
        _
      // Predicated region
      $region10: #{custom-call.9} parent=4 // pred_check
        _
      $region11: #{custom-call.9} parent=4 // pred_check_branch
        %7 = sbr.rel target = $region13
      $region12: #{custom-call.9} parent=4 // pred_region
        %s9 = ssub.s32 256, 1
        loop: start=0, step=1, limit=1
        $region14: #{custom-call.9} parent=12 // loop_pre_header
          _
        $region15: #{custom-call.9} parent=12 // loop_header
          %s11 = sphi 0, %s15
          %p12 = scmp.ge.s32.totalorder %s11, 1
          %s16 = sphi %s0, %s0
          %s17 = sphi [#allocation0], [#allocation0]
        $region16: #{custom-call.9} parent=12 // loop_header_branch
          %14 = sbr.rel (%p12) target = $region20
        $region17: #{custom-call.9} parent=12 // loop_body
          %v18 = vld [vmem:[%s16] sm:%s9]
          %19 = vst [vmem:[%s17] sm:%s9] %v18
          %v20 = vld [vmem:[%s16 + $0x8] sm:%s9]
          %21 = vst [vmem:[%s17 + $0x8] sm:%s9] %v20
        $region18: #{custom-call.9} parent=12 // loop_footer
          %s15 = sadd.s32 1, %s11
        $region19: #{custom-call.9} parent=12 // loop_footer_branch
          %10 = sbr.rel target = $region15
        $region20: #{custom-call.9} parent=12 // loop_exit
          _
      $region13: #{custom-call.9} parent=4 // pred_fallthru
        _
    $region5: #{custom-call.9} parent=1 // pred_fallthru
      _
    %38 = vnop
    %v39 = vlaneseq
    %v40 = vand.u32 %v39, 127
    %vm41 = vcmp.lt.s32.totalorder %v40, 11
    %v42 = vlaneseq
    %v43 = vshrl.u32 %v42, 7
    %vm45 = vcmp.eq.s32.totalorder %v43, %v40
    %v46 = vld [vmem:[#allocation0] sm:$0xff]
    %v47 = vsel %vm45, %v46, 0.0
    %48 = vadd.xlane.f32.xlu0 %v47
    %v49 = vpop.xlane.xlu0 %48
    %vm50 = vcmp.le.s32.totalorder %v43, %v40
    %vm51 = vmand %vm50, %vm41
    %v52 = vsel %vm51, %v46, 0.0
    %v53 = vrcp.pop %v49
    %v54 = vmul.f32 %v52, %v53
    %55 = vst [vmem:[#allocation2] sm:$0xff] %v54
    %s56 = scalar_lea.vmem [#allocation0], 8
    %s57 = scalar_lea.vmem [#allocation2], 8
    %v58 = vlaneseq
    %v59 = vshrl.u32 %v58, 7
    %v60 = vadd.s32 %v59, 8
    %vm61 = vcmp.eq.s32.totalorder %v60, %v40
    %v62 = vld [vmem:[%s56] sm:$0xff]
    %v63 = vsel %vm61, %v62, 0.0
    %64 = vadd.xlane.f32.xlu0 %v63
    %v65 = vpop.xlane.xlu0 %64
    %vm66 = vcmp.le.s32.totalorder %v60, %v40
    %vm67 = vmand %vm66, %vm41
    %v68 = vsel %vm67, %v62, 0.0
    %v69 = vrcp.pop %v65
    %v70 = vmul.f32 %v68, %v69
    %71 = vst [vmem:[%s57] sm:$0xff] %v70
    %v72 = vlaneseq
    %v73 = vand.u32 %v72, 127
    %v74 = vlaneseq
    %v75 = vshrl.u32 %v74, 7
    %vm77 = vcmp.eq.s32.totalorder %v73, %v75
    %v78 = vsel %vm77, -1.0, 0.0
    %v79 = vlaneseq
    %v80 = vand.u32 %v79, 127
    %v81 = vlaneseq
    %v82 = vshrl.u32 %v81, 7
    %v83 = vadd.s32 %v82, 8
    %vm84 = vcmp.eq.s32.totalorder %v80, %v83
    %v85 = vlaneseq
    %v86 = vand.u32 %v85, 127
    %vm87 = vcmp.eq.s32.totalorder %v86, 10
    %v88 = vsel %vm87, 1.0, -1.0
    %v89 = vsel %vm84, %v88, 0.0
    %s90 = scalar_lea.vmem [#allocation2], 9
    %v91 = vld [vmem:[%s90] ss:$0 sm:$0xff]
    %v92 = vxor.u32 %v91, 2147483648
    %v93 = vlaneseq
    %v94 = vand.u32 %v93, 127
    %vm95 = vcmp.eq.s32.totalorder %v94, 9
    %v96 = vmul.f32 %v92, %v89
    %97 = vadd.xlane.f32.xlu0 %v96
    %v98 = vpop.xlane.xlu0 %97
    %v99 = vsel %vm95, %v98, %v89
    %s100 = scalar_lea.vmem [#allocation2], 8
    %v101 = vld [vmem:[%s100] ss:$0 sm:$0xff]
    %v102 = vxor.u32 %v101, 2147483648
    %v103 = vlaneseq
    %v104 = vand.u32 %v103, 127
    %vm105 = vcmp.eq.s32.totalorder %v104, 8
    %v106 = vmul.f32 %v102, %v99
    %107 = vadd.xlane.f32.xlu0 %v106
    %v108 = vpop.xlane.xlu0 %107
    %v109 = vsel %vm105, %v108, %v99
    %s110 = scalar_lea.vmem [#allocation2], 7
    %v111 = vld [vmem:[%s110] ss:$0 sm:$0xff]
    %v112 = vxor.u32 %v111, 2147483648
    %v113 = vlaneseq
    %v114 = vand.u32 %v113, 127
    %vm115 = vcmp.eq.s32.totalorder %v114, 7
    %v116 = vmul.f32 %v112, %v78
    %117 = vadd.xlane.f32.xlu0 %v116
    %v118 = vpop.xlane.xlu0 %117
    %v119 = vsel %vm115, %v118, %v78
    %v120 = vmul.f32 %v112, %v109
    %121 = vadd.xlane.f32.xlu0 %v120
    %v122 = vpop.xlane.xlu0 %121
    %v123 = vsel %vm115, %v122, %v109
    %s124 = scalar_lea.vmem [#allocation2], 6
    %v125 = vld [vmem:[%s124] ss:$0 sm:$0xff]
    %v126 = vxor.u32 %v125, 2147483648
    %v127 = vlaneseq
    %v128 = vand.u32 %v127, 127
    %vm129 = vcmp.eq.s32.totalorder %v128, 6
    %v130 = vmul.f32 %v126, %v119
    %131 = vadd.xlane.f32.xlu0 %v130
    %v132 = vpop.xlane.xlu0 %131
    %v133 = vsel %vm129, %v132, %v119
    %v134 = vmul.f32 %v126, %v123
    %135 = vadd.xlane.f32.xlu0 %v134
    %v136 = vpop.xlane.xlu0 %135
    %v137 = vsel %vm129, %v136, %v123
    %s138 = scalar_lea.vmem [#allocation2], 5
    %v139 = vld [vmem:[%s138] ss:$0 sm:$0xff]
    %v140 = vxor.u32 %v139, 2147483648
    %v141 = vlaneseq
    %v142 = vand.u32 %v141, 127
    %vm143 = vcmp.eq.s32.totalorder %v142, 5
    %v144 = vmul.f32 %v140, %v133
    %145 = vadd.xlane.f32.xlu0 %v144
    %v146 = vpop.xlane.xlu0 %145
    %v147 = vsel %vm143, %v146, %v133
    %v148 = vmul.f32 %v140, %v137
    %149 = vadd.xlane.f32.xlu0 %v148
    %v150 = vpop.xlane.xlu0 %149
    %v151 = vsel %vm143, %v150, %v137
    %s152 = scalar_lea.vmem [#allocation2], 4
    %v153 = vld [vmem:[%s152] ss:$0 sm:$0xff]
    %v154 = vxor.u32 %v153, 2147483648
    %v155 = vlaneseq
    %v156 = vand.u32 %v155, 127
    %vm157 = vcmp.eq.s32.totalorder %v156, 4
    %v158 = vmul.f32 %v154, %v147
    %159 = vadd.xlane.f32.xlu0 %v158
    %v160 = vpop.xlane.xlu0 %159
    %v161 = vsel %vm157, %v160, %v147
    %v162 = vmul.f32 %v154, %v151
    %163 = vadd.xlane.f32.xlu0 %v162
    %v164 = vpop.xlane.xlu0 %163
    %v165 = vsel %vm157, %v164, %v151
    %s166 = scalar_lea.vmem [#allocation2], 3
    %v167 = vld [vmem:[%s166] ss:$0 sm:$0xff]
    %v168 = vxor.u32 %v167, 2147483648
    %v169 = vlaneseq
    %v170 = vand.u32 %v169, 127
    %vm171 = vcmp.eq.s32.totalorder %v170, 3
    %v172 = vmul.f32 %v168, %v161
    %173 = vadd.xlane.f32.xlu0 %v172
    %v174 = vpop.xlane.xlu0 %173
    %v175 = vsel %vm171, %v174, %v161
    %v176 = vmul.f32 %v168, %v165
    %177 = vadd.xlane.f32.xlu0 %v176
    %v178 = vpop.xlane.xlu0 %177
    %v179 = vsel %vm171, %v178, %v165
    %s180 = scalar_lea.vmem [#allocation2], 2
    %v181 = vld [vmem:[%s180] ss:$0 sm:$0xff]
    %v182 = vxor.u32 %v181, 2147483648
    %v183 = vlaneseq
    %v184 = vand.u32 %v183, 127
    %vm185 = vcmp.eq.s32.totalorder %v184, 2
    %v186 = vmul.f32 %v182, %v175
    %187 = vadd.xlane.f32.xlu0 %v186
    %v188 = vpop.xlane.xlu0 %187
    %v189 = vsel %vm185, %v188, %v175
    %v190 = vmul.f32 %v182, %v179
    %191 = vadd.xlane.f32.xlu0 %v190
    %v192 = vpop.xlane.xlu0 %191
    %v193 = vsel %vm185, %v192, %v179
    %s194 = scalar_lea.vmem [#allocation2], 1
    %v195 = vld [vmem:[%s194] ss:$0 sm:$0xff]
    %v196 = vxor.u32 %v195, 2147483648
    %v197 = vlaneseq
    %v198 = vand.u32 %v197, 127
    %vm199 = vcmp.eq.s32.totalorder %v198, 1
    %v200 = vmul.f32 %v196, %v189
    %201 = vadd.xlane.f32.xlu0 %v200
    %v202 = vpop.xlane.xlu0 %201
    %v203 = vsel %vm199, %v202, %v189
    %v204 = vmul.f32 %v196, %v193
    %205 = vadd.xlane.f32.xlu0 %v204
    %v206 = vpop.xlane.xlu0 %205
    %v207 = vsel %vm199, %v206, %v193
    %v208 = vld [vmem:[#allocation2] ss:$0 sm:$0xff]
    %v209 = vxor.u32 %v208, 2147483648
    %v210 = vlaneseq
    %v211 = vand.u32 %v210, 127
    %vm212 = vcmp.eq.s32.totalorder %v211, 0
    %v213 = vmul.f32 %v209, %v203
    %214 = vadd.xlane.f32.xlu0 %v213
    %v215 = vpop.xlane.xlu0 %214
    %v216 = vsel %vm212, %v215, %v203
    %v217 = vmul.f32 %v209, %v207
    %218 = vadd.xlane.f32.xlu0 %v217
    %v219 = vpop.xlane.xlu0 %218
    %v220 = vsel %vm212, %v219, %v207
    %v221 = vrcp.pop %v49
    %v222 = vmul.f32 %v216, %v221
    %vm223 = vweird.f32 %v49
    %v224 = vsel %vm223, %v216, %v222
    %225 = vst [vmem:[#allocation1] sm:$0xff] %v224
    %v226 = vrcp.pop %v65
    %v227 = vmul.f32 %v220, %v226
    %vm228 = vweird.f32 %v65
    %v229 = vsel %vm228, %v220, %v227
    %s230 = scalar_lea.vmem [#allocation1], 8
    %231 = vst [vmem:[%s230] sm:$0xff] %v229
    // Predicated region
    $region36: #{custom-call.9} parent=1 // pred_check
      _
    $region37: #{custom-call.9} parent=1 // pred_check_branch
      %233 = sbr.rel (0) target = $region39
    $region38: #{custom-call.9} parent=1 // pred_region
      // Predicated region
      $region40: #{custom-call.9} parent=38 // pred_check
        _
      $region41: #{custom-call.9} parent=38 // pred_check_branch
        %235 = sbr.rel (0) target = $region43
      $region42: #{custom-call.9} parent=38 // pred_region
        // Predicated region
        $region55: #{custom-call.9} parent=42 // pred_check
          _
        $region56: #{custom-call.9} parent=42 // pred_check_branch
          %253 = sbr.rel (0) target = $region58
        $region57: #{custom-call.9} parent=42 // pred_region
          loop: start=0, step=1, limit=1
          $region59: #{custom-call.9} parent=57 // loop_pre_header
            _
          $region60: #{custom-call.9} parent=57 // loop_header
            %s255 = sphi 0, %s259
            %p256 = scmp.ge.s32.totalorder %s255, 1
            %s260 = sphi [#allocation1], [#allocation1]
            %s261 = sphi %s1, %s1
          $region61: #{custom-call.9} parent=57 // loop_header_branch
            %258 = sbr.rel (%p256) target = $region65
          $region62: #{custom-call.9} parent=57 // loop_body
            %v262 = vld [vmem:[%s260] sm:$0xff]
            %263 = vst [vmem:[%s261] sm:$0xff] %v262
            %v264 = vld [vmem:[%s260 + $0x8] sm:$0xff]
            %265 = vst [vmem:[%s261 + $0x8] sm:$0xff] %v264
          $region63: #{custom-call.9} parent=57 // loop_footer
            %s259 = sadd.s32 1, %s255
          $region64: #{custom-call.9} parent=57 // loop_footer_branch
            %254 = sbr.rel target = $region60
          $region65: #{custom-call.9} parent=57 // loop_exit
            _
        $region58: #{custom-call.9} parent=42 // pred_fallthru
          _
        // Predicated region
        $region66: #{custom-call.9} parent=42 // pred_check
          _
        $region67: #{custom-call.9} parent=42 // pred_check_branch
          %267 = sbr.rel target = $region69
        $region68: #{custom-call.9} parent=42 // pred_region
          _
        $region69: #{custom-call.9} parent=42 // pred_fallthru
          _
      $region43: #{custom-call.9} parent=38 // pred_fallthru
        _
      // Predicated region
      $region44: #{custom-call.9} parent=38 // pred_check
        _
      $region45: #{custom-call.9} parent=38 // pred_check_branch
        %237 = sbr.rel target = $region47
      $region46: #{custom-call.9} parent=38 // pred_region
        %s239 = ssub.s32 256, 1
        loop: start=0, step=1, limit=1
        $region48: #{custom-call.9} parent=46 // loop_pre_header
          _
        $region49: #{custom-call.9} parent=46 // loop_header
          %s241 = sphi 0, %s245
          %p242 = scmp.ge.s32.totalorder %s241, 1
          %s246 = sphi [#allocation1], [#allocation1]
          %s247 = sphi %s1, %s1
        $region50: #{custom-call.9} parent=46 // loop_header_branch
          %244 = sbr.rel (%p242) target = $region54
        $region51: #{custom-call.9} parent=46 // loop_body
          %v248 = vld [vmem:[%s246] sm:%s239]
          %249 = vst [vmem:[%s247] sm:%s239] %v248
          %v250 = vld [vmem:[%s246 + $0x8] sm:%s239]
          %251 = vst [vmem:[%s247 + $0x8] sm:%s239] %v250
        $region52: #{custom-call.9} parent=46 // loop_footer
          %s245 = sadd.s32 1, %s241
        $region53: #{custom-call.9} parent=46 // loop_footer_branch
          %240 = sbr.rel target = $region49
        $region54: #{custom-call.9} parent=46 // loop_exit
          _
      $region47: #{custom-call.9} parent=38 // pred_fallthru
        _
    $region39: #{custom-call.9} parent=1 // pred_fallthru
      _
    %268 = vnop

// kernel: custom-call.10
$region0: #{custom-call.10}
  %s0 = inlined_call_operand.vmem [shape: f32[1,11,11], index: 0, kind: input, shape index: {}]
  %s1 = inlined_call_operand.vmem [shape: f32[1,11,11], index: 1, kind: output, shape index: {}]
  $region1: #{custom-call.10} parent=0
    #allocation0 [shape = 'u8[8192]{0}', space=vmem, size = 0x2000, scoped, tag = 'operand span for operand 0']
    #allocation1 [shape = 'u8[8192]{0}', space=vmem, size = 0x2000, scoped, tag = 'operand span for operand 1']
    #allocation2 [shape = 'f32[11,11]{1,0}', space=vmem, size = 0x2000, scoped, tag = 'rescaled input a']
    // Predicated region
    $region2: #{custom-call.10} parent=1 // pred_check
      _
    $region3: #{custom-call.10} parent=1 // pred_check_branch
      %3 = sbr.rel (0) target = $region5
    $region4: #{custom-call.10} parent=1 // pred_region
      // Predicated region
      $region6: #{custom-call.10} parent=4 // pred_check
        _
      $region7: #{custom-call.10} parent=4 // pred_check_branch
        %5 = sbr.rel (0) target = $region9
      $region8: #{custom-call.10} parent=4 // pred_region
        // Predicated region
        $region21: #{custom-call.10} parent=8 // pred_check
          _
        $region22: #{custom-call.10} parent=8 // pred_check_branch
          %23 = sbr.rel (0) target = $region24
        $region23: #{custom-call.10} parent=8 // pred_region
          loop: start=0, step=1, limit=1
          $region25: #{custom-call.10} parent=23 // loop_pre_header
            _
          $region26: #{custom-call.10} parent=23 // loop_header
            %s25 = sphi 0, %s29
            %p26 = scmp.ge.s32.totalorder %s25, 1
            %s30 = sphi %s0, %s0
            %s31 = sphi [#allocation0], [#allocation0]
          $region27: #{custom-call.10} parent=23 // loop_header_branch
            %28 = sbr.rel (%p26) target = $region31
          $region28: #{custom-call.10} parent=23 // loop_body
            %v32 = vld [vmem:[%s30] sm:$0xff]
            %33 = vst [vmem:[%s31] sm:$0xff] %v32
            %v34 = vld [vmem:[%s30 + $0x8] sm:$0xff]
            %35 = vst [vmem:[%s31 + $0x8] sm:$0xff] %v34
          $region29: #{custom-call.10} parent=23 // loop_footer
            %s29 = sadd.s32 1, %s25
          $region30: #{custom-call.10} parent=23 // loop_footer_branch
            %24 = sbr.rel target = $region26
          $region31: #{custom-call.10} parent=23 // loop_exit
            _
        $region24: #{custom-call.10} parent=8 // pred_fallthru
          _
        // Predicated region
        $region32: #{custom-call.10} parent=8 // pred_check
          _
        $region33: #{custom-call.10} parent=8 // pred_check_branch
          %37 = sbr.rel target = $region35
        $region34: #{custom-call.10} parent=8 // pred_region
          _
        $region35: #{custom-call.10} parent=8 // pred_fallthru
          _
      $region9: #{custom-call.10} parent=4 // pred_fallthru
        _
      // Predicated region
      $region10: #{custom-call.10} parent=4 // pred_check
        _
      $region11: #{custom-call.10} parent=4 // pred_check_branch
        %7 = sbr.rel target = $region13
      $region12: #{custom-call.10} parent=4 // pred_region
        %s9 = ssub.s32 256, 1
        loop: start=0, step=1, limit=1
        $region14: #{custom-call.10} parent=12 // loop_pre_header
          _
        $region15: #{custom-call.10} parent=12 // loop_header
          %s11 = sphi 0, %s15
          %p12 = scmp.ge.s32.totalorder %s11, 1
          %s16 = sphi %s0, %s0
          %s17 = sphi [#allocation0], [#allocation0]
        $region16: #{custom-call.10} parent=12 // loop_header_branch
          %14 = sbr.rel (%p12) target = $region20
        $region17: #{custom-call.10} parent=12 // loop_body
          %v18 = vld [vmem:[%s16] sm:%s9]
          %19 = vst [vmem:[%s17] sm:%s9] %v18
          %v20 = vld [vmem:[%s16 + $0x8] sm:%s9]
          %21 = vst [vmem:[%s17 + $0x8] sm:%s9] %v20
        $region18: #{custom-call.10} parent=12 // loop_footer
          %s15 = sadd.s32 1, %s11
        $region19: #{custom-call.10} parent=12 // loop_footer_branch
          %10 = sbr.rel target = $region15
        $region20: #{custom-call.10} parent=12 // loop_exit
          _
      $region13: #{custom-call.10} parent=4 // pred_fallthru
        _
    $region5: #{custom-call.10} parent=1 // pred_fallthru
      _
    %38 = vnop
    %v39 = vlaneseq
    %v40 = vand.u32 %v39, 127
    %vm41 = vcmp.lt.s32.totalorder %v40, 11
    %v42 = vlaneseq
    %v43 = vshrl.u32 %v42, 7
    %vm45 = vcmp.eq.s32.totalorder %v43, %v40
    %v46 = vld [vmem:[#allocation0] sm:$0xff]
    %v47 = vsel %vm45, %v46, 0.0
    %48 = vadd.xlane.f32.xlu0 %v47
    %v49 = vpop.xlane.xlu0 %48
    %vm50 = vcmp.ge.s32.totalorder %v43, %v40
    %vm51 = vmand %vm50, %vm41
    %v52 = vsel %vm51, %v46, 0.0
    %v53 = vrcp.pop %v49
    %v54 = vmul.f32 %v52, %v53
    %55 = vst [vmem:[#allocation2] sm:$0xff] %v54
    %s56 = scalar_lea.vmem [#allocation0], 8
    %s57 = scalar_lea.vmem [#allocation2], 8
    %v58 = vlaneseq
    %v59 = vshrl.u32 %v58, 7
    %v60 = vadd.s32 %v59, 8
    %vm61 = vcmp.eq.s32.totalorder %v60, %v40
    %v62 = vld [vmem:[%s56] sm:$0xff]
    %v63 = vsel %vm61, %v62, 0.0
    %64 = vadd.xlane.f32.xlu0 %v63
    %v65 = vpop.xlane.xlu0 %64
    %vm66 = vcmp.ge.s32.totalorder %v60, %v40
    %vm67 = vmand %vm66, %vm41
    %v68 = vsel %vm67, %v62, 0.0
    %v69 = vrcp.pop %v65
    %v70 = vmul.f32 %v68, %v69
    %71 = vst [vmem:[%s57] sm:$0xff] %v70
    %v72 = vlaneseq
    %v73 = vand.u32 %v72, 127
    %v74 = vlaneseq
    %v75 = vshrl.u32 %v74, 7
    %vm77 = vcmp.eq.s32.totalorder %v73, %v75
    %v78 = vlaneseq
    %v79 = vand.u32 %v78, 127
    %vm80 = vcmp.eq.s32.totalorder %v79, 0
    %v81 = vsel %vm80, 1.0, -1.0
    %v82 = vsel %vm77, %v81, 0.0
    %v83 = vlaneseq
    %v84 = vand.u32 %v83, 127
    %v85 = vlaneseq
    %v86 = vshrl.u32 %v85, 7
    %v87 = vadd.s32 %v86, 8
    %vm88 = vcmp.eq.s32.totalorder %v84, %v87
    %v89 = vsel %vm88, -1.0, 0.0
    %s90 = scalar_lea.vmem [#allocation2], 1
    %v91 = vld [vmem:[%s90] ss:$0 sm:$0xff]
    %v92 = vxor.u32 %v91, 2147483648
    %v93 = vlaneseq
    %v94 = vand.u32 %v93, 127
    %vm95 = vcmp.eq.s32.totalorder %v94, 1
    %v96 = vmul.f32 %v92, %v82
    %97 = vadd.xlane.f32.xlu0 %v96
    %v98 = vpop.xlane.xlu0 %97
    %v99 = vsel %vm95, %v98, %v82
    %s100 = scalar_lea.vmem [#allocation2], 2
    %v101 = vld [vmem:[%s100] ss:$0 sm:$0xff]
    %v102 = vxor.u32 %v101, 2147483648
    %v103 = vlaneseq
    %v104 = vand.u32 %v103, 127
    %vm105 = vcmp.eq.s32.totalorder %v104, 2
    %v106 = vmul.f32 %v102, %v99
    %107 = vadd.xlane.f32.xlu0 %v106
    %v108 = vpop.xlane.xlu0 %107
    %v109 = vsel %vm105, %v108, %v99
    %s110 = scalar_lea.vmem [#allocation2], 3
    %v111 = vld [vmem:[%s110] ss:$0 sm:$0xff]
    %v112 = vxor.u32 %v111, 2147483648
    %v113 = vlaneseq
    %v114 = vand.u32 %v113, 127
    %vm115 = vcmp.eq.s32.totalorder %v114, 3
    %v116 = vmul.f32 %v112, %v109
    %117 = vadd.xlane.f32.xlu0 %v116
    %v118 = vpop.xlane.xlu0 %117
    %v119 = vsel %vm115, %v118, %v109
    %s120 = scalar_lea.vmem [#allocation2], 4
    %v121 = vld [vmem:[%s120] ss:$0 sm:$0xff]
    %v122 = vxor.u32 %v121, 2147483648
    %v123 = vlaneseq
    %v124 = vand.u32 %v123, 127
    %vm125 = vcmp.eq.s32.totalorder %v124, 4
    %v126 = vmul.f32 %v122, %v119
    %127 = vadd.xlane.f32.xlu0 %v126
    %v128 = vpop.xlane.xlu0 %127
    %v129 = vsel %vm125, %v128, %v119
    %s130 = scalar_lea.vmem [#allocation2], 5
    %v131 = vld [vmem:[%s130] ss:$0 sm:$0xff]
    %v132 = vxor.u32 %v131, 2147483648
    %v133 = vlaneseq
    %v134 = vand.u32 %v133, 127
    %vm135 = vcmp.eq.s32.totalorder %v134, 5
    %v136 = vmul.f32 %v132, %v129
    %137 = vadd.xlane.f32.xlu0 %v136
    %v138 = vpop.xlane.xlu0 %137
    %v139 = vsel %vm135, %v138, %v129
    %s140 = scalar_lea.vmem [#allocation2], 6
    %v141 = vld [vmem:[%s140] ss:$0 sm:$0xff]
    %v142 = vxor.u32 %v141, 2147483648
    %v143 = vlaneseq
    %v144 = vand.u32 %v143, 127
    %vm145 = vcmp.eq.s32.totalorder %v144, 6
    %v146 = vmul.f32 %v142, %v139
    %147 = vadd.xlane.f32.xlu0 %v146
    %v148 = vpop.xlane.xlu0 %147
    %v149 = vsel %vm145, %v148, %v139
    %s150 = scalar_lea.vmem [#allocation2], 7
    %v151 = vld [vmem:[%s150] ss:$0 sm:$0xff]
    %v152 = vxor.u32 %v151, 2147483648
    %v153 = vlaneseq
    %v154 = vand.u32 %v153, 127
    %vm155 = vcmp.eq.s32.totalorder %v154, 7
    %v156 = vmul.f32 %v152, %v149
    %157 = vadd.xlane.f32.xlu0 %v156
    %v158 = vpop.xlane.xlu0 %157
    %v159 = vsel %vm155, %v158, %v149
    %s160 = scalar_lea.vmem [#allocation2], 8
    %v161 = vld [vmem:[%s160] ss:$0 sm:$0xff]
    %v162 = vxor.u32 %v161, 2147483648
    %v163 = vlaneseq
    %v164 = vand.u32 %v163, 127
    %vm165 = vcmp.eq.s32.totalorder %v164, 8
    %v166 = vmul.f32 %v162, %v159
    %167 = vadd.xlane.f32.xlu0 %v166
    %v168 = vpop.xlane.xlu0 %167
    %v169 = vsel %vm165, %v168, %v159
    %v170 = vmul.f32 %v162, %v89
    %171 = vadd.xlane.f32.xlu0 %v170
    %v172 = vpop.xlane.xlu0 %171
    %v173 = vsel %vm165, %v172, %v89
    %s174 = scalar_lea.vmem [#allocation2], 9
    %v175 = vld [vmem:[%s174] ss:$0 sm:$0xff]
    %v176 = vxor.u32 %v175, 2147483648
    %v177 = vlaneseq
    %v178 = vand.u32 %v177, 127
    %vm179 = vcmp.eq.s32.totalorder %v178, 9
    %v180 = vmul.f32 %v176, %v169
    %181 = vadd.xlane.f32.xlu0 %v180
    %v182 = vpop.xlane.xlu0 %181
    %v183 = vsel %vm179, %v182, %v169
    %v184 = vmul.f32 %v176, %v173
    %185 = vadd.xlane.f32.xlu0 %v184
    %v186 = vpop.xlane.xlu0 %185
    %v187 = vsel %vm179, %v186, %v173
    %s188 = scalar_lea.vmem [#allocation2], 10
    %v189 = vld [vmem:[%s188] ss:$0 sm:$0xff]
    %v190 = vxor.u32 %v189, 2147483648
    %v191 = vlaneseq
    %v192 = vand.u32 %v191, 127
    %vm193 = vcmp.eq.s32.totalorder %v192, 10
    %v194 = vmul.f32 %v190, %v183
    %195 = vadd.xlane.f32.xlu0 %v194
    %v196 = vpop.xlane.xlu0 %195
    %v197 = vsel %vm193, %v196, %v183
    %v198 = vmul.f32 %v190, %v187
    %199 = vadd.xlane.f32.xlu0 %v198
    %v200 = vpop.xlane.xlu0 %199
    %v201 = vsel %vm193, %v200, %v187
    %v202 = vrcp.pop %v49
    %v203 = vmul.f32 %v197, %v202
    %vm204 = vweird.f32 %v49
    %v205 = vsel %vm204, %v197, %v203
    %206 = vst [vmem:[#allocation1] sm:$0xff] %v205
    %v207 = vrcp.pop %v65
    %v208 = vmul.f32 %v201, %v207
    %vm209 = vweird.f32 %v65
    %v210 = vsel %vm209, %v201, %v208
    %s211 = scalar_lea.vmem [#allocation1], 8
    %212 = vst [vmem:[%s211] sm:$0xff] %v210
    // Predicated region
    $region36: #{custom-call.10} parent=1 // pred_check
      _
    $region37: #{custom-call.10} parent=1 // pred_check_branch
      %214 = sbr.rel (0) target = $region39
    $region38: #{custom-call.10} parent=1 // pred_region
      // Predicated region
      $region40: #{custom-call.10} parent=38 // pred_check
        _
      $region41: #{custom-call.10} parent=38 // pred_check_branch
        %216 = sbr.rel (0) target = $region43
      $region42: #{custom-call.10} parent=38 // pred_region
        // Predicated region
        $region55: #{custom-call.10} parent=42 // pred_check
          _
        $region56: #{custom-call.10} parent=42 // pred_check_branch
          %234 = sbr.rel (0) target = $region58
        $region57: #{custom-call.10} parent=42 // pred_region
          loop: start=0, step=1, limit=1
          $region59: #{custom-call.10} parent=57 // loop_pre_header
            _
          $region60: #{custom-call.10} parent=57 // loop_header
            %s236 = sphi 0, %s240
            %p237 = scmp.ge.s32.totalorder %s236, 1
            %s241 = sphi [#allocation1], [#allocation1]
            %s242 = sphi %s1, %s1
          $region61: #{custom-call.10} parent=57 // loop_header_branch
            %239 = sbr.rel (%p237) target = $region65
          $region62: #{custom-call.10} parent=57 // loop_body
            %v243 = vld [vmem:[%s241] sm:$0xff]
            %244 = vst [vmem:[%s242] sm:$0xff] %v243
            %v245 = vld [vmem:[%s241 + $0x8] sm:$0xff]
            %246 = vst [vmem:[%s242 + $0x8] sm:$0xff] %v245
          $region63: #{custom-call.10} parent=57 // loop_footer
            %s240 = sadd.s32 1, %s236
          $region64: #{custom-call.10} parent=57 // loop_footer_branch
            %235 = sbr.rel target = $region60
          $region65: #{custom-call.10} parent=57 // loop_exit
            _
        $region58: #{custom-call.10} parent=42 // pred_fallthru
          _
        // Predicated region
        $region66: #{custom-call.10} parent=42 // pred_check
          _
        $region67: #{custom-call.10} parent=42 // pred_check_branch
          %248 = sbr.rel target = $region69
        $region68: #{custom-call.10} parent=42 // pred_region
          _
        $region69: #{custom-call.10} parent=42 // pred_fallthru
          _
      $region43: #{custom-call.10} parent=38 // pred_fallthru
        _
      // Predicated region
      $region44: #{custom-call.10} parent=38 // pred_check
        _
      $region45: #{custom-call.10} parent=38 // pred_check_branch
        %218 = sbr.rel target = $region47
      $region46: #{custom-call.10} parent=38 // pred_region
        %s220 = ssub.s32 256, 1
        loop: start=0, step=1, limit=1
        $region48: #{custom-call.10} parent=46 // loop_pre_header
          _
        $region49: #{custom-call.10} parent=46 // loop_header
          %s222 = sphi 0, %s226
          %p223 = scmp.ge.s32.totalorder %s222, 1
          %s227 = sphi [#allocation1], [#allocation1]
          %s228 = sphi %s1, %s1
        $region50: #{custom-call.10} parent=46 // loop_header_branch
          %225 = sbr.rel (%p223) target = $region54
        $region51: #{custom-call.10} parent=46 // loop_body
          %v229 = vld [vmem:[%s227] sm:%s220]
          %230 = vst [vmem:[%s228] sm:%s220] %v229
          %v231 = vld [vmem:[%s227 + $0x8] sm:%s220]
          %232 = vst [vmem:[%s228 + $0x8] sm:%s220] %v231
        $region52: #{custom-call.10} parent=46 // loop_footer
          %s226 = sadd.s32 1, %s222
        $region53: #{custom-call.10} parent=46 // loop_footer_branch
          %221 = sbr.rel target = $region49
        $region54: #{custom-call.10} parent=46 // loop_exit
          _
      $region47: #{custom-call.10} parent=38 // pred_fallthru
        _
    $region39: #{custom-call.10} parent=1 // pred_fallthru
      _
    %249 = vnop

// kernel: tps_forward.1
$region0: #{tps_forward.1}
  #allocation0 [shape = 'u32[]', space=smem, size = 0x4, offset = 0x4, fixed_abs, tag = 'smem constant byte address 0x4 - core index']
  #allocation1 [shape = 'u32[144,128]{1,0:T(1,128)}', space=vmem, size = 0x12000, scoped, tag = 'internal scratch']
  %s0 = inlined_call_operand.vmem [shape: f32[1,46], index: 0, kind: input, shape index: {}]
  %s1 = inlined_call_operand.vmem [shape: f32[1,2,16,16], index: 1, kind: output, shape index: {}]
  %s2 = sld [smem:[#allocation0]]
  $region75: #{tps_forward.1} parent=0
    _
  %s4 = ssub.s32 1, %s2
  %s5 = scalar_select 0, %s4, %s2
  $region1: #{tps_forward.1} parent=0
    #allocation2 [shape = 'u8[512]{0}', space=smem, size = 0x200, scoped, tag = 'input window, operand 0, single buffered']
    #allocation3 [shape = 's32[2]{0}', space=sflag, size = 0x8, scoped, tag = 'scoped memory for tps_forward.1']
    #allocation4 [shape = 'u8[16384]{0}', space=vmem, size = 0x4000, scoped, tag = 'output window, operand 0']
    %6 = vsyncpa [#allocation3], 0
    loop: start=0, step=1, limit=4
    $region2: #{tps_forward.1} parent=1 // loop_pre_header
      _
    $region3: #{tps_forward.1} parent=1 // loop_header
      %s8 = sphi 0, %s12
      %p9 = scmp.ge.s32.totalorder %s8, 4
      %s15 = sphi 0, %s34
      %s16 = sphi 0, %s30
      %s17 = sphi 0, %s26
      %s18 = sphi 0, %s15
      %s19 = sphi 0, %s16
      %s20 = sphi 0, %s17
      %s21 = sphi 0, %s18
      %s22 = sphi 0, %s19
      %s23 = sphi 0, %s20
      %s35 = sphi 0, %s35
      %s37 = sphi 0, %s35
      %s38 = sphi 0, %s37
      %s52 = sphi 0, %s38
      %s62 = sphi 0, %s64
      %s65 = sphi 0, %s62
      %s66 = sphi 0, %s65
      %s82 = sphi 0, %s66
    $region4: #{tps_forward.1} parent=1 // loop_header_branch
      %11 = sbr.rel (%p9) target = $region8
    $region5: #{tps_forward.1} parent=1 // loop_body
      %s13 = ssub.s32 %s8, 1
      %s14 = ssub.s32 %s8, 2
      %s24 = sadd.s32 1, %s17
      %p25 = scmp.ge.s32.totalorder %s24, 1
      %s26 = scalar_select %p25, 0, %s24
      %s27 = sadd.s32 1, %s16
      %s28 = scalar_select %p25, %s27, %s16
      %p29 = scmp.ge.s32.totalorder %s28, 2
      %s30 = scalar_select %p29, 0, %s28
      %s31 = sadd.s32 1, %s15
      %s32 = scalar_select %p29, %s31, %s15
      %p33 = scmp.ge.s32.totalorder %s32, 1
      %s34 = scalar_select %p33, 0, %s32
      %s36 = sadd.s32 %s35, 1
      %p39 = scmp.eq.s32.totalorder %s8, 1
      %p40 = scmp.ne.s32.totalorder %s35, %s37
      %p41 = scmp.eq.s32.totalorder %s8, 0
      %p42 = por %p40, %p41
      %p43 = scmp.ne.s32.totalorder %s35, %s37
      %p44 = scmp.eq.s32.totalorder %s13, 1
      %p45 = por %p43, %p44
      %p46 = scmp.ne.s32.totalorder %s37, %s38
      %p47 = scmp.eq.s32.totalorder %s13, 0
      %p48 = por %p46, %p47
      %p49 = scmp.ne.s32.totalorder %s37, %s38
      %p50 = scmp.eq.s32.totalorder %s14, 1
      %p51 = por %p49, %p50
      %p53 = scmp.ne.s32.totalorder %s38, %s52
      %p54 = scmp.eq.s32.totalorder %s14, 0
      %p55 = por %p53, %p54
      %s56 = ssub.s32 %s15, %s34
      %s57 = ssub.s32 %s16, %s30
      %s58 = sor.u32 %s56, %s57
      %s59 = ssub.s32 %s17, %s26
      %s60 = sor.u32 %s58, %s59
      %p61 = scmp.eq.s32.totalorder %s60, 0
      %s63 = sadd.s32 %s62, 1
      %s64 = scalar_select %p61, %s62, %s63
      %p67 = pneg %p61
      %p68 = scmp.eq.s32.totalorder %s8, 1
      %p69 = por %p67, %p68
      %p70 = scmp.ne.s32.totalorder %s62, %s65
      %p71 = scmp.eq.s32.totalorder %s8, 0
      %p72 = por %p70, %p71
      %p73 = scmp.ne.s32.totalorder %s62, %s65
      %p74 = scmp.eq.s32.totalorder %s13, 1
      %p75 = por %p73, %p74
      %p76 = scmp.ne.s32.totalorder %s65, %s66
      %p77 = scmp.eq.s32.totalorder %s13, 0
      %p78 = por %p76, %p77
      %p79 = scmp.ne.s32.totalorder %s65, %s66
      %p80 = scmp.eq.s32.totalorder %s14, 1
      %p81 = por %p79, %p80
      %p83 = scmp.ne.s32.totalorder %s66, %s82
      %p84 = scmp.eq.s32.totalorder %s14, 0
      %p85 = por %p83, %p84
      %p86 = scmp.le.s32.totalorder 1, %s8
      %p87 = scmp.lt.s32.totalorder %s8, 3
      %p88 = pnand %p86, %p87
      %p89 = pneg %p88
      // Predicated region
      $region9: #{tps_forward.1} parent=5 // pred_check
        _
      $region10: #{tps_forward.1} parent=5 // pred_check_branch
        %91 = sbr.rel (%p88) target = $region12
      $region11: #{tps_forward.1} parent=5 // pred_region
        %s92 = ssub.s32 %s8, 1
        // Predicated region
        $region13: #{tps_forward.1} parent=11 // pred_check
          %p93 = pneg %p48
        $region14: #{tps_forward.1} parent=11 // pred_check_branch
          %95 = sbr.rel (%p93) target = $region16
        $region15: #{tps_forward.1} parent=11 // pred_region
          %s97 = ssub.s32 16, 16
          %98 = vsyncadd [#allocation3], %s97
          %s100 = sshll.u32 %s0, 4
          %s101 = int_to_ptr.vmem [resolvable:$true] %s100
          %103 = dma.vmem_to_smem %s101, 16, [#allocation2], [#allocation3]
        $region16: #{tps_forward.1} parent=11 // pred_fallthru
          _
      $region12: #{tps_forward.1} parent=5 // pred_fallthru
        _
      %p104 = scmp.lt.s32.totalorder %s8, 2
      // Predicated region
      $region17: #{tps_forward.1} parent=5 // pred_check
        %p105 = pneg %p104
      $region18: #{tps_forward.1} parent=5 // pred_check_branch
        %107 = sbr.rel (%p105) target = $region20
      $region19: #{tps_forward.1} parent=5 // pred_region
        _
      $region20: #{tps_forward.1} parent=5 // pred_fallthru
        _
      %p108 = scmp.le.s32.totalorder 1, %s8
      %p109 = scmp.lt.s32.totalorder %s8, 3
      %p110 = pnand %p108, %p109
      %p111 = pneg %p110
      // Predicated region
      $region21: #{tps_forward.1} parent=5 // pred_check
        _
      $region22: #{tps_forward.1} parent=5 // pred_check_branch
        %113 = sbr.rel (%p110) target = $region24
      $region23: #{tps_forward.1} parent=5 // pred_region
        %s114 = ssub.s32 %s8, 1
        // Predicated region
        $region25: #{tps_forward.1} parent=23 // pred_check
          %p115 = pneg %p48
        $region26: #{tps_forward.1} parent=23 // pred_check_branch
          %117 = sbr.rel (%p115) target = $region28
        $region27: #{tps_forward.1} parent=23 // pred_region
          %118 = dma.done [#allocation3], 16
        $region28: #{tps_forward.1} parent=23 // pred_fallthru
          _
        %119 = sfence
        %p120 = pneg %p48
        %p121 = pneg %p45
        %p122 = pneg %p78
        %p123 = pneg %p75
        %s124 = sand.u32 %s65, 1
        %s125 = sand.u32 %s65, 1
        %s126 = smul.addr %s125, 16
        %s127 = scalar_lea.vmem [#allocation4], %s126
        %s128 = smul.u32 %s19, 8
        %s129 = smul.u32 %s20, 16
        %s130 = smul.u32 %s18, 128
        %s131 = sld [smem:[#allocation2 + %s130]]
        %s132 = sadd.s32 %s130, 1
        %s133 = sld [smem:[#allocation2 + %s132]]
        %s134 = sadd.s32 %s130, 2
        %s135 = sld [smem:[#allocation2 + %s134]]
        %s136 = sadd.s32 %s130, 3
        %s137 = sld [smem:[#allocation2 + %s136]]
        %s138 = sadd.s32 %s130, 4
        %s139 = sld [smem:[#allocation2 + %s138]]
        %s140 = sadd.s32 %s130, 5
        %s141 = sld [smem:[#allocation2 + %s140]]
        %s142 = sadd.s32 %s130, 6
        %s143 = sld [smem:[#allocation2 + %s142]]
        %s144 = sadd.s32 %s130, 7
        %s145 = sld [smem:[#allocation2 + %s144]]
        %s146 = sadd.s32 %s130, 8
        %s147 = sld [smem:[#allocation2 + %s146]]
        %s148 = sadd.s32 %s130, 9
        %s149 = sld [smem:[#allocation2 + %s148]]
        %s150 = sadd.s32 %s130, 10
        %s151 = sld [smem:[#allocation2 + %s150]]
        %s152 = sadd.s32 %s130, 11
        %s153 = sld [smem:[#allocation2 + %s152]]
        %s154 = sadd.s32 %s130, 12
        %s155 = sld [smem:[#allocation2 + %s154]]
        %s156 = sadd.s32 %s130, 13
        %s157 = sld [smem:[#allocation2 + %s156]]
        %s158 = sadd.s32 %s130, 14
        %s159 = sld [smem:[#allocation2 + %s158]]
        %s160 = sadd.s32 %s130, 15
        %s161 = sld [smem:[#allocation2 + %s160]]
        %s162 = sadd.s32 %s130, 16
        %s163 = sld [smem:[#allocation2 + %s162]]
        %s164 = sadd.s32 %s130, 17
        %s165 = sld [smem:[#allocation2 + %s164]]
        %s166 = sadd.s32 %s130, 18
        %s167 = sld [smem:[#allocation2 + %s166]]
        %s168 = sadd.s32 %s130, 19
        %s169 = sld [smem:[#allocation2 + %s168]]
        %s170 = sadd.s32 %s130, 20
        %s171 = sld [smem:[#allocation2 + %s170]]
        %s172 = sadd.s32 %s130, 21
        %s173 = sld [smem:[#allocation2 + %s172]]
        %s174 = sadd.s32 %s130, 22
        %s175 = sld [smem:[#allocation2 + %s174]]
        %s176 = sadd.s32 %s130, 23
        %s177 = sld [smem:[#allocation2 + %s176]]
        %s178 = sadd.s32 %s130, 24
        %s179 = sld [smem:[#allocation2 + %s178]]
        %s180 = sadd.s32 %s130, 25
        %s181 = sld [smem:[#allocation2 + %s180]]
        %s182 = sadd.s32 %s130, 26
        %s183 = sld [smem:[#allocation2 + %s182]]
        %s184 = sadd.s32 %s130, 27
        %s185 = sld [smem:[#allocation2 + %s184]]
        %s186 = sadd.s32 %s130, 28
        %s187 = sld [smem:[#allocation2 + %s186]]
        %s188 = sadd.s32 %s130, 29
        %s189 = sld [smem:[#allocation2 + %s188]]
        %s190 = sadd.s32 %s130, 30
        %s191 = sld [smem:[#allocation2 + %s190]]
        %s192 = sadd.s32 %s130, 31
        %s193 = sld [smem:[#allocation2 + %s192]]
        %s194 = sadd.s32 %s130, 32
        %s195 = sld [smem:[#allocation2 + %s194]]
        %s196 = sadd.s32 %s130, 33
        %s197 = sld [smem:[#allocation2 + %s196]]
        %s198 = sadd.s32 %s130, 34
        %s199 = sld [smem:[#allocation2 + %s198]]
        %s200 = sadd.s32 %s130, 35
        %s201 = sld [smem:[#allocation2 + %s200]]
        %s202 = sadd.s32 %s130, 36
        %s203 = sld [smem:[#allocation2 + %s202]]
        %s204 = sadd.s32 %s130, 37
        %s205 = sld [smem:[#allocation2 + %s204]]
        %s206 = sadd.s32 %s130, 38
        %s207 = sld [smem:[#allocation2 + %s206]]
        %s208 = sadd.s32 %s130, 39
        %s209 = sld [smem:[#allocation2 + %s208]]
        %s210 = sadd.s32 %s130, 40
        %s211 = sld [smem:[#allocation2 + %s210]]
        %s212 = sadd.s32 %s130, 41
        %s213 = sld [smem:[#allocation2 + %s212]]
        %s214 = sadd.s32 %s130, 42
        %s215 = sld [smem:[#allocation2 + %s214]]
        %s216 = sadd.s32 %s130, 43
        %s217 = sld [smem:[#allocation2 + %s216]]
        %s218 = sadd.s32 %s130, 44
        %s219 = sld [smem:[#allocation2 + %s218]]
        %s220 = sadd.s32 %s130, 45
        %s221 = sld [smem:[#allocation2 + %s220]]
        %v222 = vlaneseq
        %v223 = vand.u32 %v222, 127
        %v224 = vlaneseq
        %v225 = vshrl.u32 %v224, 7
        %v226 = vstv %s129
        %v227 = vadd.s32 %v223, %v226
        %v228 = vcvt.s32.f32 %v227
        %v229 = vmul.f32 %v228, 0.13333334
        %v230 = vsub.f32 %v229, 1.0
        %v231 = vcvt.s32.f32 %v225
        %v232 = vmul.f32 %v231, 0.13333334
        %v233 = vmul.f32 %v230, %v230
        %v234 = vstv %s213
        %v235 = vmul.f32 %v234, %v230
        %v236 = vstv %s211
        %v237 = vadd.f32 %v236, %v235
        %v238 = vstv %s219
        %v239 = vmul.f32 %v238, %v230
        %v240 = vstv %s217
        %v241 = vadd.f32 %v240, %v239
        %s242 = scvt.s32.f32 %s128
        %s243 = smul.f32 %s242, 0.13333334
        %s244 = ssub.f32 %s243, 1.0
        %v245 = vstv %s244
        %v246 = vadd.f32 %v232, %v245
        %v247 = vmul.f32 %v246, %v246
        %v248 = vadd.f32 %v233, %v247
        %v249 = vstv %s215
        %v250 = vmul.f32 %v249, %v246
        %v251 = vadd.f32 %v237, %v250
        %v252 = vstv %s221
        %v253 = vmul.f32 %v252, %v246
        %v254 = vadd.f32 %v241, %v253
        %v255 = vstv %s131
        %v256 = vmul.f32 %v255, %v230
        %v257 = vadd.f32 %v248, %v256
        %v258 = vstv %s147
        %v259 = vmul.f32 %v258, %v246
        %v260 = vadd.f32 %v257, %v259
        %v261 = vstv %s163
        %v262 = vadd.f32 %v260, %v261
        %v263 = vmax.f32 %v262, 1e-09
        %v264 = vlog2.pop %v263
        %v265 = vmul.f32 %v264, 0.6931472
        %v266 = vmul.f32 %v263, %v265
        %v267 = vstv %s179
        %v268 = vmul.f32 %v267, %v266
        %v269 = vadd.f32 %v251, %v268
        %v270 = vstv %s195
        %v271 = vmul.f32 %v270, %v266
        %v272 = vadd.f32 %v254, %v271
        %v273 = vstv %s133
        %v274 = vmul.f32 %v273, %v230
        %v275 = vadd.f32 %v248, %v274
        %v276 = vstv %s149
        %v277 = vmul.f32 %v276, %v246
        %v278 = vadd.f32 %v275, %v277
        %v279 = vstv %s165
        %v280 = vadd.f32 %v278, %v279
        %v281 = vmax.f32 %v280, 1e-09
        %v282 = vlog2.pop %v281
        %v283 = vmul.f32 %v282, 0.6931472
        %v284 = vmul.f32 %v281, %v283
        %v285 = vstv %s181
        %v286 = vmul.f32 %v285, %v284
        %v287 = vadd.f32 %v269, %v286
        %v288 = vstv %s197
        %v289 = vmul.f32 %v288, %v284
        %v290 = vadd.f32 %v272, %v289
        %v291 = vstv %s135
        %v292 = vmul.f32 %v291, %v230
        %v293 = vadd.f32 %v248, %v292
        %v294 = vstv %s151
        %v295 = vmul.f32 %v294, %v246
        %v296 = vadd.f32 %v293, %v295
        %v297 = vstv %s167
        %v298 = vadd.f32 %v296, %v297
        %v299 = vmax.f32 %v298, 1e-09
        %v300 = vlog2.pop %v299
        %v301 = vmul.f32 %v300, 0.6931472
        %v302 = vmul.f32 %v299, %v301
        %v303 = vstv %s183
        %v304 = vmul.f32 %v303, %v302
        %v305 = vadd.f32 %v287, %v304
        %v306 = vstv %s199
        %v307 = vmul.f32 %v306, %v302
        %v308 = vadd.f32 %v290, %v307
        %v309 = vstv %s137
        %v310 = vmul.f32 %v309, %v230
        %v311 = vadd.f32 %v248, %v310
        %v312 = vstv %s153
        %v313 = vmul.f32 %v312, %v246
        %v314 = vadd.f32 %v311, %v313
        %v315 = vstv %s169
        %v316 = vadd.f32 %v314, %v315
        %v317 = vmax.f32 %v316, 1e-09
        %v318 = vlog2.pop %v317
        %v319 = vmul.f32 %v318, 0.6931472
        %v320 = vmul.f32 %v317, %v319
        %v321 = vstv %s185
        %v322 = vmul.f32 %v321, %v320
        %v323 = vadd.f32 %v305, %v322
        %v324 = vstv %s201
        %v325 = vmul.f32 %v324, %v320
        %v326 = vadd.f32 %v308, %v325
        %v327 = vstv %s139
        %v328 = vmul.f32 %v327, %v230
        %v329 = vadd.f32 %v248, %v328
        %v330 = vstv %s155
        %v331 = vmul.f32 %v330, %v246
        %v332 = vadd.f32 %v329, %v331
        %v333 = vstv %s171
        %v334 = vadd.f32 %v332, %v333
        %v335 = vmax.f32 %v334, 1e-09
        %v336 = vlog2.pop %v335
        %v337 = vmul.f32 %v336, 0.6931472
        %v338 = vmul.f32 %v335, %v337
        %v339 = vstv %s187
        %v340 = vmul.f32 %v339, %v338
        %v341 = vadd.f32 %v323, %v340
        %v342 = vstv %s203
        %v343 = vmul.f32 %v342, %v338
        %v344 = vadd.f32 %v326, %v343
        %v345 = vstv %s141
        %v346 = vmul.f32 %v345, %v230
        %v347 = vadd.f32 %v248, %v346
        %v348 = vstv %s157
        %v349 = vmul.f32 %v348, %v246
        %v350 = vadd.f32 %v347, %v349
        %v351 = vstv %s173
        %v352 = vadd.f32 %v350, %v351
        %v353 = vmax.f32 %v352, 1e-09
        %v354 = vlog2.pop %v353
        %v355 = vmul.f32 %v354, 0.6931472
        %v356 = vmul.f32 %v353, %v355
        %v357 = vstv %s189
        %v358 = vmul.f32 %v357, %v356
        %v359 = vadd.f32 %v341, %v358
        %v360 = vstv %s205
        %v361 = vmul.f32 %v360, %v356
        %v362 = vadd.f32 %v344, %v361
        %v363 = vstv %s143
        %v364 = vmul.f32 %v363, %v230
        %v365 = vadd.f32 %v248, %v364
        %v366 = vstv %s159
        %v367 = vmul.f32 %v366, %v246
        %v368 = vadd.f32 %v365, %v367
        %v369 = vstv %s175
        %v370 = vadd.f32 %v368, %v369
        %v371 = vmax.f32 %v370, 1e-09
        %v372 = vlog2.pop %v371
        %v373 = vmul.f32 %v372, 0.6931472
        %v374 = vmul.f32 %v371, %v373
        %v375 = vstv %s191
        %v376 = vmul.f32 %v375, %v374
        %v377 = vadd.f32 %v359, %v376
        %v378 = vstv %s207
        %v379 = vmul.f32 %v378, %v374
        %v380 = vadd.f32 %v362, %v379
        %v381 = vstv %s145
        %v382 = vmul.f32 %v381, %v230
        %v383 = vadd.f32 %v248, %v382
        %v384 = vstv %s161
        %v385 = vmul.f32 %v384, %v246
        %v386 = vadd.f32 %v383, %v385
        %v387 = vstv %s177
        %v388 = vadd.f32 %v386, %v387
        %v389 = vmax.f32 %v388, 1e-09
        %v390 = vlog2.pop %v389
        %v391 = vmul.f32 %v390, 0.6931472
        %v392 = vmul.f32 %v389, %v391
        %v393 = vstv %s193
        %v394 = vmul.f32 %v393, %v392
        %v395 = vadd.f32 %v377, %v394
        %v396 = vstv %s209
        %v397 = vmul.f32 %v396, %v392
        %v398 = vadd.f32 %v380, %v397
        %vm399 = vcmask 130048
        %400 = vst.msk [vmem:[%s127] sm:$0xff] %vm399, %v395
        %s401 = scalar_lea.vmem %s127, 8 [#allocation4]
        %402 = vst.msk [vmem:[%s401] sm:$0xff] %vm399, %v398
        %s403 = sand.u32 %s65, 1
        %s404 = sand.u32 %s65, 1
        %s405 = smul.addr %s404, 16
        %s406 = scalar_lea.vmem [#allocation4], %s405
        // Predicated region
        $region29: #{tps_forward.1} parent=23 // pred_check
          %p407 = pneg %p75
        $region30: #{tps_forward.1} parent=23 // pred_check_branch
          %409 = sbr.rel (%p407) target = $region32
        $region31: #{tps_forward.1} parent=23 // pred_region
          %s410 = sadd.s32 %s20, %s19
          %s411 = smul.addr %s18, 4
          %s412 = sadd.s32 %s410, %s411
          %s413 = smul.addr %s412, 8
          %s414 = scalar_lea.vmem %s1, %s413
          // Predicated region
          $region33: #{tps_forward.1} parent=31 // pred_check
            _
          $region34: #{tps_forward.1} parent=31 // pred_check_branch
            %416 = sbr.rel (0) target = $region36
          $region35: #{tps_forward.1} parent=31 // pred_region
            // Predicated region
            $region37: #{tps_forward.1} parent=35 // pred_check
              _
            $region38: #{tps_forward.1} parent=35 // pred_check_branch
              %418 = sbr.rel (0) target = $region40
            $region39: #{tps_forward.1} parent=35 // pred_region
              // Predicated region
              $region52: #{tps_forward.1} parent=39 // pred_check
                _
              $region53: #{tps_forward.1} parent=39 // pred_check_branch
                %436 = sbr.rel (0) target = $region55
              $region54: #{tps_forward.1} parent=39 // pred_region
                loop: start=0, step=1, limit=1
                $region56: #{tps_forward.1} parent=54 // loop_pre_header
                  _
                $region57: #{tps_forward.1} parent=54 // loop_header
                  %s438 = sphi 0, %s442
                  %p439 = scmp.ge.s32.totalorder %s438, 1
                  %s443 = sphi %s406, %s406
                  %s444 = sphi %s414, %s414
                $region58: #{tps_forward.1} parent=54 // loop_header_branch
                  %441 = sbr.rel (%p439) target = $region62
                $region59: #{tps_forward.1} parent=54 // loop_body
                  %v445 = vld [vmem:[%s443] sm:$0xff]
                  %446 = vst [vmem:[%s444] sm:$0xff] %v445
                  %v447 = vld [vmem:[%s443 + $0x8] sm:$0xff]
                  %448 = vst [vmem:[%s444 + $0x10] sm:$0xff] %v447
                $region60: #{tps_forward.1} parent=54 // loop_footer
                  %s442 = sadd.s32 1, %s438
                $region61: #{tps_forward.1} parent=54 // loop_footer_branch
                  %437 = sbr.rel target = $region57
                $region62: #{tps_forward.1} parent=54 // loop_exit
                  _
              $region55: #{tps_forward.1} parent=39 // pred_fallthru
                _
              // Predicated region
              $region63: #{tps_forward.1} parent=39 // pred_check
                _
              $region64: #{tps_forward.1} parent=39 // pred_check_branch
                %450 = sbr.rel target = $region66
              $region65: #{tps_forward.1} parent=39 // pred_region
                _
              $region66: #{tps_forward.1} parent=39 // pred_fallthru
                _
            $region40: #{tps_forward.1} parent=35 // pred_fallthru
              _
            // Predicated region
            $region41: #{tps_forward.1} parent=35 // pred_check
              _
            $region42: #{tps_forward.1} parent=35 // pred_check_branch
              %420 = sbr.rel target = $region44
            $region43: #{tps_forward.1} parent=35 // pred_region
              %s422 = ssub.s32 256, 1
              loop: start=0, step=1, limit=1
              $region45: #{tps_forward.1} parent=43 // loop_pre_header
                _
              $region46: #{tps_forward.1} parent=43 // loop_header
                %s424 = sphi 0, %s428
                %p425 = scmp.ge.s32.totalorder %s424, 1
                %s429 = sphi %s406, %s406
                %s430 = sphi %s414, %s414
              $region47: #{tps_forward.1} parent=43 // loop_header_branch
                %427 = sbr.rel (%p425) target = $region51
              $region48: #{tps_forward.1} parent=43 // loop_body
                %v431 = vld [vmem:[%s429] sm:%s422]
                %432 = vst [vmem:[%s430] sm:%s422] %v431
                %v433 = vld [vmem:[%s429 + $0x8] sm:%s422]
                %434 = vst [vmem:[%s430 + $0x10] sm:%s422] %v433
              $region49: #{tps_forward.1} parent=43 // loop_footer
                %s428 = sadd.s32 1, %s424
              $region50: #{tps_forward.1} parent=43 // loop_footer_branch
                %423 = sbr.rel target = $region46
              $region51: #{tps_forward.1} parent=43 // loop_exit
                _
            $region44: #{tps_forward.1} parent=35 // pred_fallthru
              _
          $region36: #{tps_forward.1} parent=31 // pred_fallthru
            _
          %451 = vnop
        $region32: #{tps_forward.1} parent=23 // pred_fallthru
          _
      $region24: #{tps_forward.1} parent=5 // pred_fallthru
        _
      %p452 = scmp.le.s32.totalorder 2, %s8
      // Predicated region
      $region67: #{tps_forward.1} parent=5 // pred_check
        %p453 = pneg %p452
      $region68: #{tps_forward.1} parent=5 // pred_check_branch
        %455 = sbr.rel (%p453) target = $region70
      $region69: #{tps_forward.1} parent=5 // pred_region
        %s456 = ssub.s32 %s8, 2
        // Predicated region
        $region71: #{tps_forward.1} parent=69 // pred_check
          %p457 = pneg %p81
        $region72: #{tps_forward.1} parent=69 // pred_check_branch
          %459 = sbr.rel (%p457) target = $region74
        $region73: #{tps_forward.1} parent=69 // pred_region
          %s460 = sand.u32 %s66, 1
          %s461 = sand.u32 %s66, 1
          %s462 = smul.addr %s461, 16
          %s463 = scalar_lea.vmem [#allocation4], %s462
        $region74: #{tps_forward.1} parent=69 // pred_fallthru
          _
      $region70: #{tps_forward.1} parent=5 // pred_fallthru
        _
    $region6: #{tps_forward.1} parent=1 // loop_footer
      %s12 = sadd.s32 1, %s8
    $region7: #{tps_forward.1} parent=1 // loop_footer_branch
      %7 = sbr.rel target = $region3
    $region8: #{tps_forward.1} parent=1 // loop_exit
      _
    %464 = vsyncpa [#allocation3], 1
    %s465 = scalar_lea.sflag [#allocation3], 1
    %466 = vsyncpa %s465, 1

</llo_original>
